<compile_context>
chip_gen: v5e
topology: v5e:2x2
jax: 0.10.0
libtpu: 0.0.40
codegen_flags: <defaults>
</compile_context>

<pallas_src>
import functools

import jax
import jax.numpy as jnp
from jax.experimental import pallas as pl
from jax.experimental.pallas import tpu as pltpu

_LANE = 128
_SUBLANE = 16  # safe sublane multiple for both f32 (8) and bf16 (16) tiling


def _round_up(x, m):
    return ((x + m - 1) // m) * m


def _cdiv(a, b):
    return -(-a // b)


@functools.lru_cache(maxsize=1)
def _vmem_capacity_bytes():
    """Per-core VMEM capacity; conservative 64 MiB (v7x-safe) if the query fails."""
    try:
        cap = getattr(pltpu.get_tpu_info(), "vmem_capacity_bytes", None)
        if cap:
            return int(cap)
    except Exception:
        pass
    return 64 * 1024 * 1024


# ----------------------------------------------------------------------------
# Kernel
# ----------------------------------------------------------------------------
def _make_mlp_kernel(sigmoid_flags, compute_dtype, fast_sigmoid, needs_pad):
    """Kernel args: (x, w0..wN-1, bias_pack, out[, xpad_scratch])."""
    n_layers = len(sigmoid_flags)

    def kernel(x_ref, *refs):
        w_refs = refs[:n_layers]
        b_ref = refs[n_layers]
        out_ref = refs[n_layers + 1]

        if needs_pad:
            # Build the 128-lane-padded activation inside the kernel (VMEM scratch).
            # Padded columns are zero, so the zero-padded weight ROWS keep them inert
            # (even after sigmoid(0)=0.5 garbage would otherwise appear downstream).
            xpad_ref = refs[n_layers + 2]
            d_in = x_ref.shape[1]
            xpad_ref[:, d_in:] = jnp.zeros(
                (x_ref.shape[0], xpad_ref.shape[1] - d_in), compute_dtype)
            xpad_ref[:, :d_in] = x_ref[...].astype(compute_dtype)
            h = xpad_ref[...]
        else:
            h = x_ref[...].astype(compute_dtype)

        for i, use_sigmoid in enumerate(sigmoid_flags):
            w = w_refs[i][...]                           # (din_pad, dout_pad) native dtype
            acc = jnp.dot(h, w, preferred_element_type=jnp.float32)
            acc = acc + b_ref[i, : w.shape[1]].astype(jnp.float32)   # lazy per-layer bias
            if use_sigmoid:
                if fast_sigmoid:
                    # sigmoid(x) = 0.5*(1 + tanh(0.5 x)): single EUP push + VPU mul/add.
                    # Runs in compute dtype (bf16 EUP on v6e/v7x; Mosaic upcasts on v5e).
                    nxt = 0.5 * jnp.tanh(0.5 * acc.astype(compute_dtype)) + 0.5
                else:
                    nxt = jax.nn.sigmoid(acc)            # exact f32 path
            else:
                nxt = acc
            h = nxt.astype(compute_dtype) if i + 1 < n_layers else nxt

        out_ref[...] = h.astype(out_ref.dtype)

    return kernel


# ----------------------------------------------------------------------------
# Layer configuration / parameter handling
# ----------------------------------------------------------------------------
def autoencoder_layer_config(bneck_size, enc_layers, dec_layers):
    """List of (in_dim, out_dim, apply_sigmoid) mirroring the PyTorch module."""
    # The reference decoder loop iterates range(len(enc_layers)-1) but indexes
    # dec_layers -- kept intentionally to match the reference module.
    assert len(dec_layers) >= len(enc_layers), (
        "dec_layers must be at least as long as enc_layers (reference module indexing)")
    cfg = []
    for i in range(len(enc_layers) - 1):
        cfg.append((enc_layers[i], enc_layers[i + 1], True))
    cfg.append((enc_layers[-1], bneck_size, False))      # bneck_out (no activation)
    cfg.append((bneck_size, dec_layers[0], False))       # decoder bneck_out (no activation)
    for i in range(len(enc_layers) - 1):                 # loop bound matches reference
        cfg.append((dec_layers[i], dec_layers[i + 1], True))
    return cfg


def init_params(key, layer_cfg, dtype=jnp.float32):
    """PyTorch-Linear-style init: U(-1/sqrt(in), 1/sqrt(in)); weights stored (in, out)."""
    weights, biases = [], []
    for (d_in, d_out, _) in layer_cfg:
        key, kw, kb = jax.random.split(key, 3)
        bound = 1.0 / (d_in ** 0.5)
        weights.append(jax.random.uniform(kw, (d_in, d_out), dtype, -bound, bound))
        biases.append(jax.random.uniform(kb, (1, d_out), dtype, -bound, bound))
    return weights, biases


def prepare_params(weights, biases, compute_dtype=jnp.bfloat16):
    """Pad weights to 128-lane multiples (zeros) and pack biases into one f32 array.

    Zero padding of weight rows guarantees padded activation columns contribute
    nothing to real outputs. (Do not pad any other way.)
    """
    padded_w = []
    for w in weights:
        ip = _round_up(w.shape[0], _LANE)
        op = _round_up(w.shape[1], _LANE)
        padded_w.append(
            jnp.pad(w.astype(compute_dtype),
                    ((0, ip - w.shape[0]), (0, op - w.shape[1]))))
    max_op = max(w.shape[1] for w in padded_w)
    bpack = jnp.zeros((len(biases), max_op), jnp.float32)
    for i, b in enumerate(biases):
        bpack = bpack.at[i, : b.shape[-1]].set(b.reshape(-1).astype(jnp.float32))
    return padded_w, bpack


# ----------------------------------------------------------------------------
# Forward pass (pallas_call wrapper)
# ----------------------------------------------------------------------------
def _choose_tile_b(batch, max_tile):
    """>=2 grid steps when batch allows (pipelining + v7x's 2 TCs), ~4-step target,
    multiple of 16 sublanes, bounded last-tile padding waste."""
    if batch <= _SUBLANE:
        return _SUBLANE
    steps = min(4, max(2, _cdiv(batch, _SUBLANE)))
    tile = _round_up(_cdiv(batch, steps), _SUBLANE)
    return max(_SUBLANE, min(tile, max_tile))


@functools.partial(
    jax.jit,
    static_argnames=("sigmoid_flags", "out_dim", "tile_b", "fast_sigmoid",
                     "single_buffer_resident", "return_padded"))
def _autoencoder_forward_impl(x, padded_weights, bias_pack, sigmoid_flags, out_dim,
                              tile_b=None, fast_sigmoid=True,
                              single_buffer_resident=True, return_padded=False):
    batch, d_in = x.shape
    n_layers = len(padded_weights)
    assert n_layers == len(sigmoid_flags)
    compute_dtype = padded_weights[0].dtype
    d_in_pad = padded_weights[0].shape[0]
    d_out_pad = padded_weights[-1].shape[1]
    max_dpad = max(w.shape[1] for w in padded_weights)
    needs_pad = d_in_pad != d_in

    c_itemsize = jnp.dtype(compute_dtype).itemsize
    x_itemsize = jnp.dtype(x.dtype).itemsize
    out_dtype = x.dtype
    out_itemsize = jnp.dtype(out_dtype).itemsize

    weight_bytes = sum(w.size * w.dtype.itemsize for w in padded_weights)
    bias_bytes = bias_pack.size * bias_pack.dtype.itemsize
    resident_factor = 1 if single_buffer_resident else 2
    resident_bytes = resident_factor * (weight_bytes + bias_bytes)

    # --- tile / grid sizing (VMEM-capacity aware) ------------------------------
    vmem_cap = _vmem_capacity_bytes()
    vmem_budget = int(0.85 * vmem_cap)
    max_tile = 2048 if vmem_cap >= 96 * 1024 * 1024 else 1024   # v5e/v6e vs v7x

    if tile_b is None:
        tile_b = _choose_tile_b(batch, max_tile)
    else:
        tile_b = max(_SUBLANE, _round_up(int(tile_b), _SUBLANE))  # sanitize user value

    def vmem_needed(tb):
        io = (2 * tb * d_in * x_itemsize              # x tile (double buffered)
              + 2 * tb * d_out_pad * out_itemsize)    # out tile (double buffered)
        pad_scratch = tb * d_in_pad * c_itemsize if needs_pad else 0
        work = 3 * tb * max_dpad * 4                  # f32 intermediates headroom
        return resident_bytes + io + pad_scratch + work

    while tile_b > _SUBLANE and vmem_needed(tile_b) > vmem_budget:
        tile_b = max(_SUBLANE, _round_up(tile_b // 2, _SUBLANE))
    if vmem_needed(tile_b) > vmem_budget:
        # TODO(synk): stream weights layer-by-layer (pltpu.emit_pipeline) when the
        # all-weights-resident strategy does not fit VMEM (large autoencoders on v7x).
        raise ValueError(
            f"Resident weights ({weight_bytes / 2**20:.1f} MiB) do not fit the VMEM "
            f"budget ({vmem_budget / 2**20:.1f} MiB); weight streaming not implemented.")

    b_pad = _round_up(batch, tile_b)
    num_tiles = b_pad // tile_b

    # Only cheap batch-row padding happens outside the kernel (no lane-padded HBM copy).
    x_rows = jnp.pad(x, ((0, b_pad - batch), (0, 0))) if b_pad != batch else x

    # --- specs ------------------------------------------------------------------
    if single_buffer_resident:
        # Constant index_map => fetched once; a single buffer halves their VMEM footprint.
        def resident_spec(shape):
            return pl.BlockSpec(shape, lambda i: (0, 0), pipeline_mode=pl.Buffered(1))
    else:
        def resident_spec(shape):
            return pl.BlockSpec(shape, lambda i: (0, 0))

    # TODO(synk): sweep deeper input buffering (pipeline_mode=pl.Buffered(3)) on the
    # x tile per TPU generation; default double buffering is used here.
    in_specs = [pl.BlockSpec((tile_b, d_in), lambda i: (i, 0))]          # pipelined
    in_specs += [resident_spec(w.shape) for w in padded_weights]         # VMEM-resident
    in_specs += [resident_spec(bias_pack.shape)]                         # VMEM-resident
    out_specs = pl.BlockSpec((tile_b, d_out_pad), lambda i: (i, 0))      # lane-dense store

    scratch_shapes = ([pltpu.VMEM((tile_b, d_in_pad), compute_dtype)]
                      if needs_pad else [])

    kernel = _make_mlp_kernel(sigmoid_flags, compute_dtype, fast_sigmoid, needs_pad)

    flops = 2 * b_pad * sum(w.shape[0] * w.shape[1] for w in padded_weights)
    transcendentals = b_pad * sum(
        w.shape[1] for w, s in zip(padded_weights, sigmoid_flags) if s)
    bytes_accessed = (b_pad * d_in * x_itemsize + weight_bytes + bias_bytes
                      + b_pad * d_out_pad * out_itemsize)
    vmem_limit = min(vmem_budget, max(32 * 1024 * 1024, int(1.4 * vmem_needed(tile_b))))

    out_padded = pl.pallas_call(
        kernel,
        out_shape=jax.ShapeDtypeStruct((b_pad, d_out_pad), out_dtype),
        grid=(num_tiles,),
        in_specs=in_specs,
        out_specs=out_specs,
        scratch_shapes=scratch_shapes,
        compiler_params=pltpu.CompilerParams(
            dimension_semantics=("parallel",),     # batch tiles shard across TCs (v7x)
            vmem_limit_bytes=int(vmem_limit)),
        cost_estimate=pl.CostEstimate(
            flops=flops, transcendentals=transcendentals,
            bytes_accessed=bytes_accessed),
    )(x_rows, *padded_weights, bias_pack)

    if return_padded:
        # Downstream consumers that tolerate padding can skip the slice copy.
        return out_padded
    return out_padded[:batch, :out_dim]


_PIPELINE_MODE_SUPPORTED = None   # discovered on first call


def autoencoder_forward(x, padded_weights, bias_pack, sigmoid_flags, out_dim,
                        tile_b=None, fast_sigmoid=True, return_padded=False):
    """Forward pass. Tries single-buffered resident weights (pl.Buffered(1)); falls
    back to default (double-buffered) BlockSpecs if pipeline_mode is unsupported."""
    global _PIPELINE_MODE_SUPPORTED
    pw = tuple(padded_weights)
    if _PIPELINE_MODE_SUPPORTED in (None, True):
        try:
            out = _autoencoder_forward_impl(
                x, pw, bias_pack, sigmoid_flags, out_dim, tile_b=tile_b,
                fast_sigmoid=fast_sigmoid, single_buffer_resident=True,
                return_padded=return_padded)
            _PIPELINE_MODE_SUPPORTED = True
            return out
        except Exception:
            if _PIPELINE_MODE_SUPPORTED:     # it worked before; this is a real error
                raise
            _PIPELINE_MODE_SUPPORTED = False
    return _autoencoder_forward_impl(
        x, pw, bias_pack, sigmoid_flags, out_dim, tile_b=tile_b,
        fast_sigmoid=fast_sigmoid, single_buffer_resident=False,
        return_padded=return_padded)


# ----------------------------------------------------------------------------
# Reference (pure JAX, f32)
# ----------------------------------------------------------------------------
def reference_forward(x, weights, biases, sigmoid_flags):
    h = x.astype(jnp.float32)
    for w, b, sig in zip(weights, biases, sigmoid_flags):
        h = h @ w.astype(jnp.float32) + b.reshape(1, -1).astype(jnp.float32)
        if sig:
            h = jax.nn.sigmoid(h)
    return h


if __name__ == "__main__":
    # Small, deterministic configuration consistent with the module's __init__.
    bneck_size = 8
    enc_layers = (16, 32, 24)
    dec_layers = (24, 32, 16)
    batch = 2

    layer_cfg = autoencoder_layer_config(bneck_size, enc_layers, dec_layers)
    sigmoid_flags = tuple(s for (_, _, s) in layer_cfg)
    out_dim = layer_cfg[-1][1]

    key = jax.random.PRNGKey(0)
    key, kp, kx = jax.random.split(key, 3)
    weights, biases = init_params(kp, layer_cfg)
    x = jax.random.normal(kx, (batch, enc_layers[0]), jnp.float32)

    ref = reference_forward(x, weights, biases, sigmoid_flags)

    # --- f32 path, exact sigmoid: tight numerical check against the reference ---
    pw32, bp32 = prepare_params(weights, biases, jnp.float32)
    out32 = autoencoder_forward(x, pw32, bp32, sigmoid_flags, out_dim,
                                fast_sigmoid=False)
    out32 = jax.block_until_ready(out32)
    assert out32.shape == (batch, dec_layers[-1])
    assert jnp.allclose(out32.astype(jnp.float32), ref, atol=1e-5, rtol=1e-5)

    # --- bf16 fast path (MXU-native operands) + tanh-form sigmoid (bf16 EUP) ---
    pw16, bp16 = prepare_params(weights, biases, jnp.bfloat16)
    out16 = autoencoder_forward(x, pw16, bp16, sigmoid_flags, out_dim,
                                fast_sigmoid=True)
    out16 = jax.block_until_ready(out16)
    assert out16.shape == (batch, dec_layers[-1])
    assert bool(jnp.all(jnp.isfinite(out16.astype(jnp.float32))))
    assert jnp.allclose(out16.astype(jnp.float32), ref, atol=5e-2, rtol=5e-2)

    print("KERNEL_OK")
</pallas_src>

<mosaic_0001>
module attributes {stable_mosaic.version = 11 : i64} {
  func.func @kernel(%arg0: i32, %arg1: memref<16x16xf32, #tpu.memory_space<vmem>>, %arg2: memref<128x128xf32, #tpu.memory_space<vmem>>, %arg3: memref<128x128xf32, #tpu.memory_space<vmem>>, %arg4: memref<128x128xf32, #tpu.memory_space<vmem>>, %arg5: memref<128x128xf32, #tpu.memory_space<vmem>>, %arg6: memref<128x128xf32, #tpu.memory_space<vmem>>, %arg7: memref<128x128xf32, #tpu.memory_space<vmem>>, %arg8: memref<6x128xf32, #tpu.memory_space<vmem>>, %arg9: memref<16x128xf32, #tpu.memory_space<vmem>>, %arg10: memref<16x128xf32, #tpu.memory_space<vmem>>) attributes {dimension_semantics = [#tpu.dimension_semantics<parallel>], iteration_bounds = array<i64: 1>, scalar_prefetch = 0 : i64, scratch_operands = 1 : i64, tpu.core_type = #tpu.core_type<tc>, window_params = [{transform_indices = @transform_0, window_bounds = array<i64: 16, 16>}, {pipeline_mode = #tpu.pipeline_mode<synchronous>, transform_indices = @transform_1, window_bounds = array<i64: 128, 128>}, {pipeline_mode = #tpu.pipeline_mode<synchronous>, transform_indices = @transform_2, window_bounds = array<i64: 128, 128>}, {pipeline_mode = #tpu.pipeline_mode<synchronous>, transform_indices = @transform_3, window_bounds = array<i64: 128, 128>}, {pipeline_mode = #tpu.pipeline_mode<synchronous>, transform_indices = @transform_4, window_bounds = array<i64: 128, 128>}, {pipeline_mode = #tpu.pipeline_mode<synchronous>, transform_indices = @transform_5, window_bounds = array<i64: 128, 128>}, {pipeline_mode = #tpu.pipeline_mode<synchronous>, transform_indices = @transform_6, window_bounds = array<i64: 128, 128>}, {pipeline_mode = #tpu.pipeline_mode<synchronous>, transform_indices = @transform_7, window_bounds = array<i64: 6, 128>}, {transform_indices = @transform_8, window_bounds = array<i64: 16, 128>}]} {
    %cst = arith.constant 0.000000e+00 : f32
    %0 = vector.broadcast %cst : f32 to vector<16x112xf32>
    %c0 = arith.constant 0 : index
    %c16 = arith.constant 16 : index
    %1 = vector.load %arg10[%c0, %c16] : memref<16x128xf32, #tpu.memory_space<vmem>>, vector<16x112xf32>
    tpu.vector_store %arg10[%c0, %c16], %0 {strides = array<i32>} : memref<16x128xf32, #tpu.memory_space<vmem>>, vector<16x112xf32>,
    %c0_0 = arith.constant 0 : index
    %c0_1 = arith.constant 0 : index
    %2 = vector.load %arg1[%c0_0, %c0_1] : memref<16x16xf32, #tpu.memory_space<vmem>>, vector<16x16xf32>
    %c0_2 = arith.constant 0 : index
    %c0_3 = arith.constant 0 : index
    %3 = vector.load %arg10[%c0_2, %c0_3] : memref<16x128xf32, #tpu.memory_space<vmem>>, vector<16x16xf32>
    tpu.vector_store %arg10[%c0_2, %c0_3], %2 {strides = array<i32>} : memref<16x128xf32, #tpu.memory_space<vmem>>, vector<16x16xf32>,
    %c0_4 = arith.constant 0 : index
    %c0_5 = arith.constant 0 : index
    %4 = vector.load %arg10[%c0_4, %c0_5] : memref<16x128xf32, #tpu.memory_space<vmem>>, vector<16x128xf32>
    %c0_6 = arith.constant 0 : index
    %c0_7 = arith.constant 0 : index
    %5 = vector.load %arg2[%c0_6, %c0_7] : memref<128x128xf32, #tpu.memory_space<vmem>>, vector<128x128xf32>
    %cst_8 = arith.constant dense<0.000000e+00> : vector<16x128xf32>
    %6 = tpu.matmul %4, %5, %cst_8 {dimension_numbers = #tpu.dot_dimension_numbers<[1], [0], [0], [1], [0, 0, 1, 1], [], []>} : vector<16x128xf32>, vector<128x128xf32>, vector<16x128xf32> -> vector<16x128xf32>
    %c0_9 = arith.constant 0 : index
    %c0_10 = arith.constant 0 : index
    %7 = vector.load %arg8[%c0_9, %c0_10] : memref<6x128xf32, #tpu.memory_space<vmem>>, vector<1x128xf32>
    %8 = vector.shape_cast %7 : vector<1x128xf32> to vector<128xf32>
    %9 = vector.shape_cast %8 : vector<128xf32> to vector<1x128xf32>
    %10 = vector.broadcast %9 : vector<1x128xf32> to vector<16x128xf32>
    %11 = arith.addf %6, %10 : vector<16x128xf32>
    %12 = arith.negf %11 : vector<16x128xf32>
    %13 = math.exp %12 : vector<16x128xf32>
    %cst_11 = arith.constant 1.000000e+00 : f32
    %14 = vector.broadcast %cst_11 : f32 to vector<16x128xf32>
    %15 = arith.addf %14, %13 : vector<16x128xf32>
    %16 = arith.divf %14, %15 : vector<16x128xf32>
    %c0_12 = arith.constant 0 : index
    %c0_13 = arith.constant 0 : index
    %17 = vector.load %arg3[%c0_12, %c0_13] : memref<128x128xf32, #tpu.memory_space<vmem>>, vector<128x128xf32>
    %cst_14 = arith.constant dense<0.000000e+00> : vector<16x128xf32>
    %18 = tpu.matmul %16, %17, %cst_14 {dimension_numbers = #tpu.dot_dimension_numbers<[1], [0], [0], [1], [0, 0, 1, 1], [], []>} : vector<16x128xf32>, vector<128x128xf32>, vector<16x128xf32> -> vector<16x128xf32>
    %c1 = arith.constant 1 : index
    %c0_15 = arith.constant 0 : index
    %19 = vector.load %arg8[%c1, %c0_15] : memref<6x128xf32, #tpu.memory_space<vmem>>, vector<1x128xf32>
    %20 = vector.shape_cast %19 : vector<1x128xf32> to vector<128xf32>
    %21 = vector.shape_cast %20 : vector<128xf32> to vector<1x128xf32>
    %22 = vector.broadcast %21 : vector<1x128xf32> to vector<16x128xf32>
    %23 = arith.addf %18, %22 : vector<16x128xf32>
    %24 = arith.negf %23 : vector<16x128xf32>
    %25 = math.exp %24 : vector<16x128xf32>
    %cst_16 = arith.constant 1.000000e+00 : f32
    %26 = vector.broadcast %cst_16 : f32 to vector<16x128xf32>
    %27 = arith.addf %26, %25 : vector<16x128xf32>
    %28 = arith.divf %26, %27 : vector<16x128xf32>
    %c0_17 = arith.constant 0 : index
    %c0_18 = arith.constant 0 : index
    %29 = vector.load %arg4[%c0_17, %c0_18] : memref<128x128xf32, #tpu.memory_space<vmem>>, vector<128x128xf32>
    %cst_19 = arith.constant dense<0.000000e+00> : vector<16x128xf32>
    %30 = tpu.matmul %28, %29, %cst_19 {dimension_numbers = #tpu.dot_dimension_numbers<[1], [0], [0], [1], [0, 0, 1, 1], [], []>} : vector<16x128xf32>, vector<128x128xf32>, vector<16x128xf32> -> vector<16x128xf32>
    %c2 = arith.constant 2 : index
    %c0_20 = arith.constant 0 : index
    %31 = vector.load %arg8[%c2, %c0_20] : memref<6x128xf32, #tpu.memory_space<vmem>>, vector<1x128xf32>
    %32 = vector.shape_cast %31 : vector<1x128xf32> to vector<128xf32>
    %33 = vector.shape_cast %32 : vector<128xf32> to vector<1x128xf32>
    %34 = vector.broadcast %33 : vector<1x128xf32> to vector<16x128xf32>
    %35 = arith.addf %30, %34 : vector<16x128xf32>
    %c0_21 = arith.constant 0 : index
    %c0_22 = arith.constant 0 : index
    %36 = vector.load %arg5[%c0_21, %c0_22] : memref<128x128xf32, #tpu.memory_space<vmem>>, vector<128x128xf32>
    %cst_23 = arith.constant dense<0.000000e+00> : vector<16x128xf32>
    %37 = tpu.matmul %35, %36, %cst_23 {dimension_numbers = #tpu.dot_dimension_numbers<[1], [0], [0], [1], [0, 0, 1, 1], [], []>} : vector<16x128xf32>, vector<128x128xf32>, vector<16x128xf32> -> vector<16x128xf32>
    %c3 = arith.constant 3 : index
    %c0_24 = arith.constant 0 : index
    %38 = vector.load %arg8[%c3, %c0_24] : memref<6x128xf32, #tpu.memory_space<vmem>>, vector<1x128xf32>
    %39 = vector.shape_cast %38 : vector<1x128xf32> to vector<128xf32>
    %40 = vector.shape_cast %39 : vector<128xf32> to vector<1x128xf32>
    %41 = vector.broadcast %40 : vector<1x128xf32> to vector<16x128xf32>
    %42 = arith.addf %37, %41 : vector<16x128xf32>
    %c0_25 = arith.constant 0 : index
    %c0_26 = arith.constant 0 : index
    %43 = vector.load %arg6[%c0_25, %c0_26] : memref<128x128xf32, #tpu.memory_space<vmem>>, vector<128x128xf32>
    %cst_27 = arith.constant dense<0.000000e+00> : vector<16x128xf32>
    %44 = tpu.matmul %42, %43, %cst_27 {dimension_numbers = #tpu.dot_dimension_numbers<[1], [0], [0], [1], [0, 0, 1, 1], [], []>} : vector<16x128xf32>, vector<128x128xf32>, vector<16x128xf32> -> vector<16x128xf32>
    %c4 = arith.constant 4 : index
    %c0_28 = arith.constant 0 : index
    %45 = vector.load %arg8[%c4, %c0_28] : memref<6x128xf32, #tpu.memory_space<vmem>>, vector<1x128xf32>
    %46 = vector.shape_cast %45 : vector<1x128xf32> to vector<128xf32>
    %47 = vector.shape_cast %46 : vector<128xf32> to vector<1x128xf32>
    %48 = vector.broadcast %47 : vector<1x128xf32> to vector<16x128xf32>
    %49 = arith.addf %44, %48 : vector<16x128xf32>
    %50 = arith.negf %49 : vector<16x128xf32>
    %51 = math.exp %50 : vector<16x128xf32>
    %cst_29 = arith.constant 1.000000e+00 : f32
    %52 = vector.broadcast %cst_29 : f32 to vector<16x128xf32>
    %53 = arith.addf %52, %51 : vector<16x128xf32>
    %54 = arith.divf %52, %53 : vector<16x128xf32>
    %c0_30 = arith.constant 0 : index
    %c0_31 = arith.constant 0 : index
    %55 = vector.load %arg7[%c0_30, %c0_31] : memref<128x128xf32, #tpu.memory_space<vmem>>, vector<128x128xf32>
    %cst_32 = arith.constant dense<0.000000e+00> : vector<16x128xf32>
    %56 = tpu.matmul %54, %55, %cst_32 {dimension_numbers = #tpu.dot_dimension_numbers<[1], [0], [0], [1], [0, 0, 1, 1], [], []>} : vector<16x128xf32>, vector<128x128xf32>, vector<16x128xf32> -> vector<16x128xf32>
    %c5 = arith.constant 5 : index
    %c0_33 = arith.constant 0 : index
    %57 = vector.load %arg8[%c5, %c0_33] : memref<6x128xf32, #tpu.memory_space<vmem>>, vector<1x128xf32>
    %58 = vector.shape_cast %57 : vector<1x128xf32> to vector<128xf32>
    %59 = vector.shape_cast %58 : vector<128xf32> to vector<1x128xf32>
    %60 = vector.broadcast %59 : vector<1x128xf32> to vector<16x128xf32>
    %61 = arith.addf %56, %60 : vector<16x128xf32>
    %62 = arith.negf %61 : vector<16x128xf32>
    %63 = math.exp %62 : vector<16x128xf32>
    %cst_34 = arith.constant 1.000000e+00 : f32
    %64 = vector.broadcast %cst_34 : f32 to vector<16x128xf32>
    %65 = arith.addf %64, %63 : vector<16x128xf32>
    %66 = arith.divf %64, %65 : vector<16x128xf32>
    %c0_35 = arith.constant 0 : index
    %c0_36 = arith.constant 0 : index
    %67 = vector.load %arg9[%c0_35, %c0_36] : memref<16x128xf32, #tpu.memory_space<vmem>>, vector<16x128xf32>
    tpu.vector_store %arg9[%c0_35, %c0_36], %66 {strides = array<i32>} : memref<16x128xf32, #tpu.memory_space<vmem>>, vector<16x128xf32>,
    return
  }
  func.func @transform_0(%arg0: i32) -> (i32, i32) {
    %c0_i32 = arith.constant 0 : i32
    %c0_i32_0 = arith.constant 0 : i32
    return %arg0, %c0_i32 : i32, i32
  }
  func.func @transform_1(%arg0: i32) -> (i32, i32) {
    %c0_i32 = arith.constant 0 : i32
    %c0_i32_0 = arith.constant 0 : i32
    %c0_i32_1 = arith.constant 0 : i32
    return %c0_i32, %c0_i32_0 : i32, i32
  }
  func.func @transform_2(%arg0: i32) -> (i32, i32) {
    %c0_i32 = arith.constant 0 : i32
    %c0_i32_0 = arith.constant 0 : i32
    %c0_i32_1 = arith.constant 0 : i32
    return %c0_i32, %c0_i32_0 : i32, i32
  }
  func.func @transform_3(%arg0: i32) -> (i32, i32) {
    %c0_i32 = arith.constant 0 : i32
    %c0_i32_0 = arith.constant 0 : i32
    %c0_i32_1 = arith.constant 0 : i32
    return %c0_i32, %c0_i32_0 : i32, i32
  }
  func.func @transform_4(%arg0: i32) -> (i32, i32) {
    %c0_i32 = arith.constant 0 : i32
    %c0_i32_0 = arith.constant 0 : i32
    %c0_i32_1 = arith.constant 0 : i32
    return %c0_i32, %c0_i32_0 : i32, i32
  }
  func.func @transform_5(%arg0: i32) -> (i32, i32) {
    %c0_i32 = arith.constant 0 : i32
    %c0_i32_0 = arith.constant 0 : i32
    %c0_i32_1 = arith.constant 0 : i32
    return %c0_i32, %c0_i32_0 : i32, i32
  }
  func.func @transform_6(%arg0: i32) -> (i32, i32) {
    %c0_i32 = arith.constant 0 : i32
    %c0_i32_0 = arith.constant 0 : i32
    %c0_i32_1 = arith.constant 0 : i32
    return %c0_i32, %c0_i32_0 : i32, i32
  }
  func.func @transform_7(%arg0: i32) -> (i32, i32) {
    %c0_i32 = arith.constant 0 : i32
    %c0_i32_0 = arith.constant 0 : i32
    %c0_i32_1 = arith.constant 0 : i32
    return %c0_i32, %c0_i32_0 : i32, i32
  }
  func.func @transform_8(%arg0: i32) -> (i32, i32) {
    %c0_i32 = arith.constant 0 : i32
    %c0_i32_0 = arith.constant 0 : i32
    return %arg0, %c0_i32 : i32, i32
  }
}

module attributes {stable_mosaic.version = 11 : i64} {
  func.func @kernel(%arg0: i32, %arg1: memref<16x16xf32, #tpu.memory_space<vmem>>, %arg2: memref<128x128xf32, #tpu.memory_space<vmem>>, %arg3: memref<128x128xf32, #tpu.memory_space<vmem>>, %arg4: memref<128x128xf32, #tpu.memory_space<vmem>>, %arg5: memref<128x128xf32, #tpu.memory_space<vmem>>, %arg6: memref<128x128xf32, #tpu.memory_space<vmem>>, %arg7: memref<128x128xf32, #tpu.memory_space<vmem>>, %arg8: memref<6x128xf32, #tpu.memory_space<vmem>>, %arg9: memref<16x128xf32, #tpu.memory_space<vmem>>, %arg10: memref<16x128xf32, #tpu.memory_space<vmem>>) attributes {dimension_semantics = [#tpu.dimension_semantics<parallel>], iteration_bounds = array<i64: 1>, scalar_prefetch = 0 : i64, scratch_operands = 1 : i64, tpu.core_type = #tpu.core_type<tc>, window_params = [{transform_indices = @transform_0, window_bounds = array<i64: 16, 16>}, {pipeline_mode = #tpu.pipeline_mode<synchronous>, transform_indices = @transform_1, window_bounds = array<i64: 128, 128>}, {pipeline_mode = #tpu.pipeline_mode<synchronous>, transform_indices = @transform_2, window_bounds = array<i64: 128, 128>}, {pipeline_mode = #tpu.pipeline_mode<synchronous>, transform_indices = @transform_3, window_bounds = array<i64: 128, 128>}, {pipeline_mode = #tpu.pipeline_mode<synchronous>, transform_indices = @transform_4, window_bounds = array<i64: 128, 128>}, {pipeline_mode = #tpu.pipeline_mode<synchronous>, transform_indices = @transform_5, window_bounds = array<i64: 128, 128>}, {pipeline_mode = #tpu.pipeline_mode<synchronous>, transform_indices = @transform_6, window_bounds = array<i64: 128, 128>}, {pipeline_mode = #tpu.pipeline_mode<synchronous>, transform_indices = @transform_7, window_bounds = array<i64: 6, 128>}, {transform_indices = @transform_8, window_bounds = array<i64: 16, 128>}]} {
    %cst = arith.constant 0.000000e+00 : f32
    %0 = vector.broadcast %cst : f32 to vector<16x112xf32>
    %c0 = arith.constant 0 : index
    %c16 = arith.constant 16 : index
    %1 = vector.load %arg10[%c0, %c16] : memref<16x128xf32, #tpu.memory_space<vmem>>, vector<16x112xf32>
    tpu.vector_store %arg10[%c0, %c16], %0 {strides = array<i32>} : memref<16x128xf32, #tpu.memory_space<vmem>>, vector<16x112xf32>,
    %c0_0 = arith.constant 0 : index
    %c0_1 = arith.constant 0 : index
    %2 = vector.load %arg1[%c0_0, %c0_1] : memref<16x16xf32, #tpu.memory_space<vmem>>, vector<16x16xf32>
    %c0_2 = arith.constant 0 : index
    %c0_3 = arith.constant 0 : index
    %3 = vector.load %arg10[%c0_2, %c0_3] : memref<16x128xf32, #tpu.memory_space<vmem>>, vector<16x16xf32>
    tpu.vector_store %arg10[%c0_2, %c0_3], %2 {strides = array<i32>} : memref<16x128xf32, #tpu.memory_space<vmem>>, vector<16x16xf32>,
    %c0_4 = arith.constant 0 : index
    %c0_5 = arith.constant 0 : index
    %4 = vector.load %arg10[%c0_4, %c0_5] : memref<16x128xf32, #tpu.memory_space<vmem>>, vector<16x128xf32>
    %c0_6 = arith.constant 0 : index
    %c0_7 = arith.constant 0 : index
    %5 = vector.load %arg2[%c0_6, %c0_7] : memref<128x128xf32, #tpu.memory_space<vmem>>, vector<128x128xf32>
    %cst_8 = arith.constant dense<0.000000e+00> : vector<16x128xf32>
    %6 = tpu.matmul %4, %5, %cst_8 {dimension_numbers = #tpu.dot_dimension_numbers<[1], [0], [0], [1], [0, 0, 1, 1], [], []>} : vector<16x128xf32>, vector<128x128xf32>, vector<16x128xf32> -> vector<16x128xf32>
    %c0_9 = arith.constant 0 : index
    %c0_10 = arith.constant 0 : index
    %7 = vector.load %arg8[%c0_9, %c0_10] : memref<6x128xf32, #tpu.memory_space<vmem>>, vector<1x128xf32>
    %8 = vector.shape_cast %7 : vector<1x128xf32> to vector<128xf32>
    %9 = vector.shape_cast %8 : vector<128xf32> to vector<1x128xf32>
    %10 = vector.broadcast %9 : vector<1x128xf32> to vector<16x128xf32>
    %11 = arith.addf %6, %10 : vector<16x128xf32>
    %12 = arith.negf %11 : vector<16x128xf32>
    %13 = math.exp %12 : vector<16x128xf32>
    %cst_11 = arith.constant 1.000000e+00 : f32
    %14 = vector.broadcast %cst_11 : f32 to vector<16x128xf32>
    %15 = arith.addf %14, %13 : vector<16x128xf32>
    %16 = arith.divf %14, %15 : vector<16x128xf32>
    %c0_12 = arith.constant 0 : index
    %c0_13 = arith.constant 0 : index
    %17 = vector.load %arg3[%c0_12, %c0_13] : memref<128x128xf32, #tpu.memory_space<vmem>>, vector<128x128xf32>
    %cst_14 = arith.constant dense<0.000000e+00> : vector<16x128xf32>
    %18 = tpu.matmul %16, %17, %cst_14 {dimension_numbers = #tpu.dot_dimension_numbers<[1], [0], [0], [1], [0, 0, 1, 1], [], []>} : vector<16x128xf32>, vector<128x128xf32>, vector<16x128xf32> -> vector<16x128xf32>
    %c1 = arith.constant 1 : index
    %c0_15 = arith.constant 0 : index
    %19 = vector.load %arg8[%c1, %c0_15] : memref<6x128xf32, #tpu.memory_space<vmem>>, vector<1x128xf32>
    %20 = vector.shape_cast %19 : vector<1x128xf32> to vector<128xf32>
    %21 = vector.shape_cast %20 : vector<128xf32> to vector<1x128xf32>
    %22 = vector.broadcast %21 : vector<1x128xf32> to vector<16x128xf32>
    %23 = arith.addf %18, %22 : vector<16x128xf32>
    %24 = arith.negf %23 : vector<16x128xf32>
    %25 = math.exp %24 : vector<16x128xf32>
    %cst_16 = arith.constant 1.000000e+00 : f32
    %26 = vector.broadcast %cst_16 : f32 to vector<16x128xf32>
    %27 = arith.addf %26, %25 : vector<16x128xf32>
    %28 = arith.divf %26, %27 : vector<16x128xf32>
    %c0_17 = arith.constant 0 : index
    %c0_18 = arith.constant 0 : index
    %29 = vector.load %arg4[%c0_17, %c0_18] : memref<128x128xf32, #tpu.memory_space<vmem>>, vector<128x128xf32>
    %cst_19 = arith.constant dense<0.000000e+00> : vector<16x128xf32>
    %30 = tpu.matmul %28, %29, %cst_19 {dimension_numbers = #tpu.dot_dimension_numbers<[1], [0], [0], [1], [0, 0, 1, 1], [], []>} : vector<16x128xf32>, vector<128x128xf32>, vector<16x128xf32> -> vector<16x128xf32>
    %c2 = arith.constant 2 : index
    %c0_20 = arith.constant 0 : index
    %31 = vector.load %arg8[%c2, %c0_20] : memref<6x128xf32, #tpu.memory_space<vmem>>, vector<1x128xf32>
    %32 = vector.shape_cast %31 : vector<1x128xf32> to vector<128xf32>
    %33 = vector.shape_cast %32 : vector<128xf32> to vector<1x128xf32>
    %34 = vector.broadcast %33 : vector<1x128xf32> to vector<16x128xf32>
    %35 = arith.addf %30, %34 : vector<16x128xf32>
    %c0_21 = arith.constant 0 : index
    %c0_22 = arith.constant 0 : index
    %36 = vector.load %arg5[%c0_21, %c0_22] : memref<128x128xf32, #tpu.memory_space<vmem>>, vector<128x128xf32>
    %cst_23 = arith.constant dense<0.000000e+00> : vector<16x128xf32>
    %37 = tpu.matmul %35, %36, %cst_23 {dimension_numbers = #tpu.dot_dimension_numbers<[1], [0], [0], [1], [0, 0, 1, 1], [], []>} : vector<16x128xf32>, vector<128x128xf32>, vector<16x128xf32> -> vector<16x128xf32>
    %c3 = arith.constant 3 : index
    %c0_24 = arith.constant 0 : index
    %38 = vector.load %arg8[%c3, %c0_24] : memref<6x128xf32, #tpu.memory_space<vmem>>, vector<1x128xf32>
    %39 = vector.shape_cast %38 : vector<1x128xf32> to vector<128xf32>
    %40 = vector.shape_cast %39 : vector<128xf32> to vector<1x128xf32>
    %41 = vector.broadcast %40 : vector<1x128xf32> to vector<16x128xf32>
    %42 = arith.addf %37, %41 : vector<16x128xf32>
    %c0_25 = arith.constant 0 : index
    %c0_26 = arith.constant 0 : index
    %43 = vector.load %arg6[%c0_25, %c0_26] : memref<128x128xf32, #tpu.memory_space<vmem>>, vector<128x128xf32>
    %cst_27 = arith.constant dense<0.000000e+00> : vector<16x128xf32>
    %44 = tpu.matmul %42, %43, %cst_27 {dimension_numbers = #tpu.dot_dimension_numbers<[1], [0], [0], [1], [0, 0, 1, 1], [], []>} : vector<16x128xf32>, vector<128x128xf32>, vector<16x128xf32> -> vector<16x128xf32>
    %c4 = arith.constant 4 : index
    %c0_28 = arith.constant 0 : index
    %45 = vector.load %arg8[%c4, %c0_28] : memref<6x128xf32, #tpu.memory_space<vmem>>, vector<1x128xf32>
    %46 = vector.shape_cast %45 : vector<1x128xf32> to vector<128xf32>
    %47 = vector.shape_cast %46 : vector<128xf32> to vector<1x128xf32>
    %48 = vector.broadcast %47 : vector<1x128xf32> to vector<16x128xf32>
    %49 = arith.addf %44, %48 : vector<16x128xf32>
    %50 = arith.negf %49 : vector<16x128xf32>
    %51 = math.exp %50 : vector<16x128xf32>
    %cst_29 = arith.constant 1.000000e+00 : f32
    %52 = vector.broadcast %cst_29 : f32 to vector<16x128xf32>
    %53 = arith.addf %52, %51 : vector<16x128xf32>
    %54 = arith.divf %52, %53 : vector<16x128xf32>
    %c0_30 = arith.constant 0 : index
    %c0_31 = arith.constant 0 : index
    %55 = vector.load %arg7[%c0_30, %c0_31] : memref<128x128xf32, #tpu.memory_space<vmem>>, vector<128x128xf32>
    %cst_32 = arith.constant dense<0.000000e+00> : vector<16x128xf32>
    %56 = tpu.matmul %54, %55, %cst_32 {dimension_numbers = #tpu.dot_dimension_numbers<[1], [0], [0], [1], [0, 0, 1, 1], [], []>} : vector<16x128xf32>, vector<128x128xf32>, vector<16x128xf32> -> vector<16x128xf32>
    %c5 = arith.constant 5 : index
    %c0_33 = arith.constant 0 : index
    %57 = vector.load %arg8[%c5, %c0_33] : memref<6x128xf32, #tpu.memory_space<vmem>>, vector<1x128xf32>
    %58 = vector.shape_cast %57 : vector<1x128xf32> to vector<128xf32>
    %59 = vector.shape_cast %58 : vector<128xf32> to vector<1x128xf32>
    %60 = vector.broadcast %59 : vector<1x128xf32> to vector<16x128xf32>
    %61 = arith.addf %56, %60 : vector<16x128xf32>
    %62 = arith.negf %61 : vector<16x128xf32>
    %63 = math.exp %62 : vector<16x128xf32>
    %cst_34 = arith.constant 1.000000e+00 : f32
    %64 = vector.broadcast %cst_34 : f32 to vector<16x128xf32>
    %65 = arith.addf %64, %63 : vector<16x128xf32>
    %66 = arith.divf %64, %65 : vector<16x128xf32>
    %c0_35 = arith.constant 0 : index
    %c0_36 = arith.constant 0 : index
    %67 = vector.load %arg9[%c0_35, %c0_36] : memref<16x128xf32, #tpu.memory_space<vmem>>, vector<16x128xf32>
    tpu.vector_store %arg9[%c0_35, %c0_36], %66 {strides = array<i32>} : memref<16x128xf32, #tpu.memory_space<vmem>>, vector<16x128xf32>,
    return
  }
  func.func @transform_0(%arg0: i32) -> (i32, i32) {
    %c0_i32 = arith.constant 0 : i32
    %c0_i32_0 = arith.constant 0 : i32
    return %arg0, %c0_i32 : i32, i32
  }
  func.func @transform_1(%arg0: i32) -> (i32, i32) {
    %c0_i32 = arith.constant 0 : i32
    %c0_i32_0 = arith.constant 0 : i32
    %c0_i32_1 = arith.constant 0 : i32
    return %c0_i32, %c0_i32_0 : i32, i32
  }
  func.func @transform_2(%arg0: i32) -> (i32, i32) {
    %c0_i32 = arith.constant 0 : i32
    %c0_i32_0 = arith.constant 0 : i32
    %c0_i32_1 = arith.constant 0 : i32
    return %c0_i32, %c0_i32_0 : i32, i32
  }
  func.func @transform_3(%arg0: i32) -> (i32, i32) {
    %c0_i32 = arith.constant 0 : i32
    %c0_i32_0 = arith.constant 0 : i32
    %c0_i32_1 = arith.constant 0 : i32
    return %c0_i32, %c0_i32_0 : i32, i32
  }
  func.func @transform_4(%arg0: i32) -> (i32, i32) {
    %c0_i32 = arith.constant 0 : i32
    %c0_i32_0 = arith.constant 0 : i32
    %c0_i32_1 = arith.constant 0 : i32
    return %c0_i32, %c0_i32_0 : i32, i32
  }
  func.func @transform_5(%arg0: i32) -> (i32, i32) {
    %c0_i32 = arith.constant 0 : i32
    %c0_i32_0 = arith.constant 0 : i32
    %c0_i32_1 = arith.constant 0 : i32
    return %c0_i32, %c0_i32_0 : i32, i32
  }
  func.func @transform_6(%arg0: i32) -> (i32, i32) {
    %c0_i32 = arith.constant 0 : i32
    %c0_i32_0 = arith.constant 0 : i32
    %c0_i32_1 = arith.constant 0 : i32
    return %c0_i32, %c0_i32_0 : i32, i32
  }
  func.func @transform_7(%arg0: i32) -> (i32, i32) {
    %c0_i32 = arith.constant 0 : i32
    %c0_i32_0 = arith.constant 0 : i32
    %c0_i32_1 = arith.constant 0 : i32
    return %c0_i32, %c0_i32_0 : i32, i32
  }
  func.func @transform_8(%arg0: i32) -> (i32, i32) {
    %c0_i32 = arith.constant 0 : i32
    %c0_i32_0 = arith.constant 0 : i32
    return %arg0, %c0_i32 : i32, i32
  }
}

</mosaic_0001>

<llo_original>
// kernel: _autoencoder_forward_impl.1
$region0: #{_autoencoder_forward_impl.1}
  #allocation0 [shape = 'u32[]', space=smem, size = 0x4, offset = 0x4, fixed_abs, tag = 'smem constant byte address 0x4 - core index']
  #allocation1 [shape = 'u32[72,128]{1,0:T(1,128)}', space=vmem, size = 0x9000, scoped, tag = 'internal scratch']
  #allocation2 [shape = 'f32[16,128]{1,0:T(8,128)}', space=vmem, size = 0x2000, scoped, tag = 'scratch operand']
  %s0 = inlined_call_operand.vmem [shape: f32[16,16], index: 0, kind: input, shape index: {}]
  %s1 = inlined_call_operand.hbm [shape: f32[128,128], index: 1, kind: input, shape index: {}]
  %s2 = inlined_call_operand.hbm [shape: f32[128,128], index: 2, kind: input, shape index: {}]
  %s3 = inlined_call_operand.hbm [shape: f32[128,128], index: 3, kind: input, shape index: {}]
  %s4 = inlined_call_operand.hbm [shape: f32[128,128], index: 4, kind: input, shape index: {}]
  %s5 = inlined_call_operand.hbm [shape: f32[128,128], index: 5, kind: input, shape index: {}]
  %s6 = inlined_call_operand.hbm [shape: f32[128,128], index: 6, kind: input, shape index: {}]
  %s7 = inlined_call_operand.vmem [shape: f32[6,128], index: 7, kind: input, shape index: {}]
  %s8 = inlined_call_operand.vmem [shape: f32[16,128], index: 8, kind: output, shape index: {}]
  %s9 = sld [smem:[#allocation0]]
  $region66: #{_autoencoder_forward_impl.1} parent=0
    _
  %s11 = ssub.s32 1, %s9
  %s12 = scalar_select 0, %s11, %s9
  $region1: #{_autoencoder_forward_impl.1} parent=0
    #allocation3 [shape = 'u8[65536]{0}', space=vmem, size = 0x10000, scoped, tag = 'input window, operand 1, single buffered']
    #allocation4 [shape = 's32[1]{0}', space=sflag, size = 0x4, scoped, tag = 'scoped memory for _autoencoder_forward_impl.1']
    #allocation5 [shape = 'u8[65536]{0}', space=vmem, size = 0x10000, scoped, tag = 'input window, operand 2, single buffered']
    #allocation6 [shape = 's32[1]{0}', space=sflag, size = 0x4, scoped, tag = 'scoped memory for _autoencoder_forward_impl.1']
    #allocation7 [shape = 'u8[65536]{0}', space=vmem, size = 0x10000, scoped, tag = 'input window, operand 3, single buffered']
    #allocation8 [shape = 'u8[65536]{0}', space=vmem, size = 0x10000, scoped, tag = 'input window, operand 4, single buffered']
    #allocation9 [shape = 's32[1]{0}', space=sflag, size = 0x4, scoped, tag = 'scoped memory for _autoencoder_forward_impl.1']
    #allocation10 [shape = 'u8[65536]{0}', space=vmem, size = 0x10000, scoped, tag = 'input window, operand 5, single buffered']
    #allocation11 [shape = 'u8[65536]{0}', space=vmem, size = 0x10000, scoped, tag = 'input window, operand 6, single buffered']
    #allocation12 [shape = 's32[1]{0}', space=sflag, size = 0x4, scoped, tag = 'scoped memory for _autoencoder_forward_impl.1']
    %13 = vsyncpa [#allocation4], 0
    %14 = vsyncpa [#allocation6], 0
    %15 = vsyncpa [#allocation9], 0
    %16 = vsyncpa [#allocation12], 0
    // Predicated region
    $region2: #{_autoencoder_forward_impl.1} parent=1 // pred_check
      _
    $region3: #{_autoencoder_forward_impl.1} parent=1 // pred_check_branch
      %18 = sbr.rel (0) target = $region5
    $region4: #{_autoencoder_forward_impl.1} parent=1 // pred_region
      _
    $region5: #{_autoencoder_forward_impl.1} parent=1 // pred_fallthru
      _
    // Predicated region
    $region6: #{_autoencoder_forward_impl.1} parent=1 // pred_check
      _
    $region7: #{_autoencoder_forward_impl.1} parent=1 // pred_check_branch
      %20 = sbr.rel (0) target = $region9
    $region8: #{_autoencoder_forward_impl.1} parent=1 // pred_region
      %22 = vsyncadd [#allocation4], 0
      %s23 = sshll.u32 %s1, 4
      %s24 = int_to_ptr.hbm [resolvable:$true] %s23
      %s25 = sshll.u32 [#allocation3], 4
      %s26 = int_to_ptr.vmem [resolvable:$true] %s25
      %31 = dma.hbm_to_vmem [thread:$0]  %s24, 2048, %s26, [#allocation4], 128, 128, 8
    $region9: #{_autoencoder_forward_impl.1} parent=1 // pred_fallthru
      _
    // Predicated region
    $region10: #{_autoencoder_forward_impl.1} parent=1 // pred_check
      _
    $region11: #{_autoencoder_forward_impl.1} parent=1 // pred_check_branch
      %33 = sbr.rel (0) target = $region13
    $region12: #{_autoencoder_forward_impl.1} parent=1 // pred_region
      %35 = vsyncadd [#allocation6], 0
      %s36 = sshll.u32 %s2, 4
      %s37 = int_to_ptr.hbm [resolvable:$true] %s36
      %s38 = sshll.u32 [#allocation5], 4
      %s39 = int_to_ptr.vmem [resolvable:$true] %s38
      %44 = dma.hbm_to_vmem [thread:$0]  %s37, 2048, %s39, [#allocation6], 128, 128, 8
    $region13: #{_autoencoder_forward_impl.1} parent=1 // pred_fallthru
      _
    // Predicated region
    $region14: #{_autoencoder_forward_impl.1} parent=1 // pred_check
      _
    $region15: #{_autoencoder_forward_impl.1} parent=1 // pred_check_branch
      %46 = sbr.rel (0) target = $region17
    $region16: #{_autoencoder_forward_impl.1} parent=1 // pred_region
      %48 = vsyncadd [#allocation6], 0
      %s49 = sshll.u32 %s3, 4
      %s50 = int_to_ptr.hbm [resolvable:$true] %s49
      %s51 = sshll.u32 [#allocation7], 4
      %s52 = int_to_ptr.vmem [resolvable:$true] %s51
      %57 = dma.hbm_to_vmem [thread:$0]  %s50, 2048, %s52, [#allocation6], 128, 128, 8
    $region17: #{_autoencoder_forward_impl.1} parent=1 // pred_fallthru
      _
    // Predicated region
    $region18: #{_autoencoder_forward_impl.1} parent=1 // pred_check
      _
    $region19: #{_autoencoder_forward_impl.1} parent=1 // pred_check_branch
      %59 = sbr.rel (0) target = $region21
    $region20: #{_autoencoder_forward_impl.1} parent=1 // pred_region
      %61 = vsyncadd [#allocation9], 0
      %s62 = sshll.u32 %s4, 4
      %s63 = int_to_ptr.hbm [resolvable:$true] %s62
      %s64 = sshll.u32 [#allocation8], 4
      %s65 = int_to_ptr.vmem [resolvable:$true] %s64
      %70 = dma.hbm_to_vmem [thread:$0]  %s63, 2048, %s65, [#allocation9], 128, 128, 8
    $region21: #{_autoencoder_forward_impl.1} parent=1 // pred_fallthru
      _
    // Predicated region
    $region22: #{_autoencoder_forward_impl.1} parent=1 // pred_check
      _
    $region23: #{_autoencoder_forward_impl.1} parent=1 // pred_check_branch
      %72 = sbr.rel (0) target = $region25
    $region24: #{_autoencoder_forward_impl.1} parent=1 // pred_region
      %74 = vsyncadd [#allocation9], 0
      %s75 = sshll.u32 %s5, 4
      %s76 = int_to_ptr.hbm [resolvable:$true] %s75
      %s77 = sshll.u32 [#allocation10], 4
      %s78 = int_to_ptr.vmem [resolvable:$true] %s77
      %83 = dma.hbm_to_vmem [thread:$0]  %s76, 2048, %s78, [#allocation9], 128, 128, 8
    $region25: #{_autoencoder_forward_impl.1} parent=1 // pred_fallthru
      _
    // Predicated region
    $region26: #{_autoencoder_forward_impl.1} parent=1 // pred_check
      _
    $region27: #{_autoencoder_forward_impl.1} parent=1 // pred_check_branch
      %85 = sbr.rel (0) target = $region29
    $region28: #{_autoencoder_forward_impl.1} parent=1 // pred_region
      %87 = vsyncadd [#allocation12], 0
      %s88 = sshll.u32 %s6, 4
      %s89 = int_to_ptr.hbm [resolvable:$true] %s88
      %s90 = sshll.u32 [#allocation11], 4
      %s91 = int_to_ptr.vmem [resolvable:$true] %s90
      %96 = dma.hbm_to_vmem [thread:$0]  %s89, 2048, %s91, [#allocation12], 128, 128, 8
    $region29: #{_autoencoder_forward_impl.1} parent=1 // pred_fallthru
      _
    // Predicated region
    $region30: #{_autoencoder_forward_impl.1} parent=1 // pred_check
      _
    $region31: #{_autoencoder_forward_impl.1} parent=1 // pred_check_branch
      %98 = sbr.rel (0) target = $region33
    $region32: #{_autoencoder_forward_impl.1} parent=1 // pred_region
      _
    $region33: #{_autoencoder_forward_impl.1} parent=1 // pred_fallthru
      _
    // Predicated region
    $region34: #{_autoencoder_forward_impl.1} parent=1 // pred_check
      _
    $region35: #{_autoencoder_forward_impl.1} parent=1 // pred_check_branch
      %100 = sbr.rel (0) target = $region37
    $region36: #{_autoencoder_forward_impl.1} parent=1 // pred_region
      %102 = dma.done [#allocation4], 2048
    $region37: #{_autoencoder_forward_impl.1} parent=1 // pred_fallthru
      _
    // Predicated region
    $region38: #{_autoencoder_forward_impl.1} parent=1 // pred_check
      _
    $region39: #{_autoencoder_forward_impl.1} parent=1 // pred_check_branch
      %104 = sbr.rel (0) target = $region41
    $region40: #{_autoencoder_forward_impl.1} parent=1 // pred_region
      %106 = dma.done [#allocation6], 2048
    $region41: #{_autoencoder_forward_impl.1} parent=1 // pred_fallthru
      _
    // Predicated region
    $region42: #{_autoencoder_forward_impl.1} parent=1 // pred_check
      _
    $region43: #{_autoencoder_forward_impl.1} parent=1 // pred_check_branch
      %108 = sbr.rel (0) target = $region45
    $region44: #{_autoencoder_forward_impl.1} parent=1 // pred_region
      %110 = dma.done [#allocation6], 2048
    $region45: #{_autoencoder_forward_impl.1} parent=1 // pred_fallthru
      _
    // Predicated region
    $region46: #{_autoencoder_forward_impl.1} parent=1 // pred_check
      _
    $region47: #{_autoencoder_forward_impl.1} parent=1 // pred_check_branch
      %112 = sbr.rel (0) target = $region49
    $region48: #{_autoencoder_forward_impl.1} parent=1 // pred_region
      %114 = dma.done [#allocation9], 2048
    $region49: #{_autoencoder_forward_impl.1} parent=1 // pred_fallthru
      _
    // Predicated region
    $region50: #{_autoencoder_forward_impl.1} parent=1 // pred_check
      _
    $region51: #{_autoencoder_forward_impl.1} parent=1 // pred_check_branch
      %116 = sbr.rel (0) target = $region53
    $region52: #{_autoencoder_forward_impl.1} parent=1 // pred_region
      %118 = dma.done [#allocation9], 2048
    $region53: #{_autoencoder_forward_impl.1} parent=1 // pred_fallthru
      _
    // Predicated region
    $region54: #{_autoencoder_forward_impl.1} parent=1 // pred_check
      _
    $region55: #{_autoencoder_forward_impl.1} parent=1 // pred_check_branch
      %120 = sbr.rel (0) target = $region57
    $region56: #{_autoencoder_forward_impl.1} parent=1 // pred_region
      %122 = dma.done [#allocation12], 2048
    $region57: #{_autoencoder_forward_impl.1} parent=1 // pred_fallthru
      _
    %vm123 = vcmask 1047680
    %124 = vst.msk [vmem:[#allocation2] sm:$0xff] %vm123, 0.0
    %125 = vst.msk [vmem:[#allocation2 + $0x8] sm:$0xff] %vm123, 0.0
    %v126 = vld [vmem:[%s0] sm:$0xff]
    %v127 = vld [vmem:[%s0 + $0x8] sm:$0xff]
    %vm128 = vcmask 130048
    %129 = vst.msk [vmem:[#allocation2] sm:$0xff] %vm128, %v126
    %130 = vst.msk [vmem:[#allocation2 + $0x8] sm:$0xff] %vm128, %v127
    %v131 = vld [vmem:[#allocation2] sm:$0xff]
    %v132 = vld [vmem:[#allocation2 + $0x8] sm:$0xff]
    %v133 = vld [vmem:[#allocation3] sm:$0xff]
    %v134 = vld [vmem:[#allocation3 + $0x8] sm:$0xff]
    %v135 = vld [vmem:[#allocation3 + $0x10] sm:$0xff]
    %v136 = vld [vmem:[#allocation3 + $0x18] sm:$0xff]
    %v137 = vld [vmem:[#allocation3 + $0x20] sm:$0xff]
    %v138 = vld [vmem:[#allocation3 + $0x28] sm:$0xff]
    %v139 = vld [vmem:[#allocation3 + $0x30] sm:$0xff]
    %v140 = vld [vmem:[#allocation3 + $0x38] sm:$0xff]
    %v141 = vld [vmem:[#allocation3 + $0x40] sm:$0xff]
    %v142 = vld [vmem:[#allocation3 + $0x48] sm:$0xff]
    %v143 = vld [vmem:[#allocation3 + $0x50] sm:$0xff]
    %v144 = vld [vmem:[#allocation3 + $0x58] sm:$0xff]
    %v145 = vld [vmem:[#allocation3 + $0x60] sm:$0xff]
    %v146 = vld [vmem:[#allocation3 + $0x68] sm:$0xff]
    %v147 = vld [vmem:[#allocation3 + $0x70] sm:$0xff]
    %v148 = vld [vmem:[#allocation3 + $0x78] sm:$0xff]
    %v149 = vld [vmem:[%s7] sm:$0x1]
    %v150 = vperm.slane %v149, 0
    %151 = vmatpush.msra.mxu0 %v148
    %152 = vmatpush.msra.mxu0 %v147
    %153 = vmatpush.msra.mxu0 %v146
    %154 = vmatpush.msra.mxu0 %v145
    %155 = vmatpush.msra.mxu0 %v144
    %156 = vmatpush.msra.mxu0 %v143
    %157 = vmatpush.msra.mxu0 %v142
    %158 = vmatpush.msra.mxu0 %v141
    %159 = vmatpush.msra.mxu0 %v140
    %160 = vmatpush.msra.mxu0 %v139
    %161 = vmatpush.msra.mxu0 %v138
    %162 = vmatpush.msra.mxu0 %v137
    %163 = vmatpush.msra.mxu0 %v136
    %164 = vmatpush.msra.mxu0 %v135
    %165 = vmatpush.msra.mxu0 %v134
    %166 = vmatpush.msra.mxu0 %v133
    %167 = vmatmul.f32.gmra.mxu0 %v131
    %v168 = vpop.f32.mrf.mxu0
    %v169 = vadd.f32 %v150, %v168
    %170 = vmatmul.f32.gmra.mxu0 %v132
    %v171 = vpop.f32.mrf.mxu0
    %v172 = vadd.f32 %v150, %v171
    %173 = vdwg.mxu0
    %v174 = vxor.u32 %v169, 2147483648
    %v175 = vxor.u32 %v172, 2147483648
    %v176 = vmul.f32 %v174, 1.442695
    %v177 = vpow.pop %v176
    %v178 = vmul.f32 %v175, 1.442695
    %v179 = vpow.pop %v178
    %v180 = vadd.f32 %v177, 1.0
    %v181 = vadd.f32 %v179, 1.0
    %v182 = vrcp.pop %v180
    %v183 = vmul.f32 %v180, %v182
    %v184 = vsub.f32 1.0, %v183
    %v185 = vmul.f32 %v182, %v184
    %v186 = vadd.f32 %v182, %v185
    %vm187 = vweird.f32 %v180
    %vm188 = vweird.f32 %v182
    %vm189 = vmor %vm187, %vm188
    %v190 = vsel %vm189, %v182, %v186
    %v191 = vand.u32 2147483647, %v180
    %vm192 = vcmp.eq.f32.partialorder %v191, 8.507059e+37
    %v193 = vand.u32 %v180, 2147483648
    %v194 = vor.u32 1.1754944e-38, %v193
    %v195 = vsel %vm192, %v194, %v190
    %v196 = vmul.f32 1.0, %v195
    %v197 = vrcp.pop %v181
    %v198 = vmul.f32 %v181, %v197
    %v199 = vsub.f32 1.0, %v198
    %v200 = vmul.f32 %v197, %v199
    %v201 = vadd.f32 %v197, %v200
    %vm202 = vweird.f32 %v181
    %vm203 = vweird.f32 %v197
    %vm204 = vmor %vm202, %vm203
    %v205 = vsel %vm204, %v197, %v201
    %v206 = vand.u32 2147483647, %v181
    %vm207 = vcmp.eq.f32.partialorder %v206, 8.507059e+37
    %v208 = vand.u32 %v181, 2147483648
    %v209 = vor.u32 1.1754944e-38, %v208
    %v210 = vsel %vm207, %v209, %v205
    %v211 = vmul.f32 1.0, %v210
    %v212 = vld [vmem:[#allocation5] sm:$0xff]
    %v213 = vld [vmem:[#allocation5 + $0x8] sm:$0xff]
    %v214 = vld [vmem:[#allocation5 + $0x10] sm:$0xff]
    %v215 = vld [vmem:[#allocation5 + $0x18] sm:$0xff]
    %v216 = vld [vmem:[#allocation5 + $0x20] sm:$0xff]
    %v217 = vld [vmem:[#allocation5 + $0x28] sm:$0xff]
    %v218 = vld [vmem:[#allocation5 + $0x30] sm:$0xff]
    %v219 = vld [vmem:[#allocation5 + $0x38] sm:$0xff]
    %v220 = vld [vmem:[#allocation5 + $0x40] sm:$0xff]
    %v221 = vld [vmem:[#allocation5 + $0x48] sm:$0xff]
    %v222 = vld [vmem:[#allocation5 + $0x50] sm:$0xff]
    %v223 = vld [vmem:[#allocation5 + $0x58] sm:$0xff]
    %v224 = vld [vmem:[#allocation5 + $0x60] sm:$0xff]
    %v225 = vld [vmem:[#allocation5 + $0x68] sm:$0xff]
    %v226 = vld [vmem:[#allocation5 + $0x70] sm:$0xff]
    %v227 = vld [vmem:[#allocation5 + $0x78] sm:$0xff]
    %v228 = vld [vmem:[%s7 + $0x1] sm:$0x1]
    %v229 = vperm.slane %v228, 0
    %230 = vmatpush.msra.mxu0 %v227
    %231 = vmatpush.msra.mxu0 %v226
    %232 = vmatpush.msra.mxu0 %v225
    %233 = vmatpush.msra.mxu0 %v224
    %234 = vmatpush.msra.mxu0 %v223
    %235 = vmatpush.msra.mxu0 %v222
    %236 = vmatpush.msra.mxu0 %v221
    %237 = vmatpush.msra.mxu0 %v220
    %238 = vmatpush.msra.mxu0 %v219
    %239 = vmatpush.msra.mxu0 %v218
    %240 = vmatpush.msra.mxu0 %v217
    %241 = vmatpush.msra.mxu0 %v216
    %242 = vmatpush.msra.mxu0 %v215
    %243 = vmatpush.msra.mxu0 %v214
    %244 = vmatpush.msra.mxu0 %v213
    %245 = vmatpush.msra.mxu0 %v212
    %246 = vmatmul.f32.gmra.mxu0 %v196
    %v247 = vpop.f32.mrf.mxu0
    %v248 = vadd.f32 %v229, %v247
    %249 = vmatmul.f32.gmra.mxu0 %v211
    %v250 = vpop.f32.mrf.mxu0
    %v251 = vadd.f32 %v229, %v250
    %252 = vdwg.mxu0
    %v253 = vxor.u32 %v248, 2147483648
    %v254 = vxor.u32 %v251, 2147483648
    %v255 = vmul.f32 %v253, 1.442695
    %v256 = vpow.pop %v255
    %v257 = vmul.f32 %v254, 1.442695
    %v258 = vpow.pop %v257
    %v259 = vadd.f32 %v256, 1.0
    %v260 = vadd.f32 %v258, 1.0
    %v261 = vrcp.pop %v259
    %v262 = vmul.f32 %v259, %v261
    %v263 = vsub.f32 1.0, %v262
    %v264 = vmul.f32 %v261, %v263
    %v265 = vadd.f32 %v261, %v264
    %vm266 = vweird.f32 %v259
    %vm267 = vweird.f32 %v261
    %vm268 = vmor %vm266, %vm267
    %v269 = vsel %vm268, %v261, %v265
    %v270 = vand.u32 2147483647, %v259
    %vm271 = vcmp.eq.f32.partialorder %v270, 8.507059e+37
    %v272 = vand.u32 %v259, 2147483648
    %v273 = vor.u32 1.1754944e-38, %v272
    %v274 = vsel %vm271, %v273, %v269
    %v275 = vmul.f32 1.0, %v274
    %v276 = vrcp.pop %v260
    %v277 = vmul.f32 %v260, %v276
    %v278 = vsub.f32 1.0, %v277
    %v279 = vmul.f32 %v276, %v278
    %v280 = vadd.f32 %v276, %v279
    %vm281 = vweird.f32 %v260
    %vm282 = vweird.f32 %v276
    %vm283 = vmor %vm281, %vm282
    %v284 = vsel %vm283, %v276, %v280
    %v285 = vand.u32 2147483647, %v260
    %vm286 = vcmp.eq.f32.partialorder %v285, 8.507059e+37
    %v287 = vand.u32 %v260, 2147483648
    %v288 = vor.u32 1.1754944e-38, %v287
    %v289 = vsel %vm286, %v288, %v284
    %v290 = vmul.f32 1.0, %v289
    %v291 = vld [vmem:[#allocation7] sm:$0xff]
    %v292 = vld [vmem:[#allocation7 + $0x8] sm:$0xff]
    %v293 = vld [vmem:[#allocation7 + $0x10] sm:$0xff]
    %v294 = vld [vmem:[#allocation7 + $0x18] sm:$0xff]
    %v295 = vld [vmem:[#allocation7 + $0x20] sm:$0xff]
    %v296 = vld [vmem:[#allocation7 + $0x28] sm:$0xff]
    %v297 = vld [vmem:[#allocation7 + $0x30] sm:$0xff]
    %v298 = vld [vmem:[#allocation7 + $0x38] sm:$0xff]
    %v299 = vld [vmem:[#allocation7 + $0x40] sm:$0xff]
    %v300 = vld [vmem:[#allocation7 + $0x48] sm:$0xff]
    %v301 = vld [vmem:[#allocation7 + $0x50] sm:$0xff]
    %v302 = vld [vmem:[#allocation7 + $0x58] sm:$0xff]
    %v303 = vld [vmem:[#allocation7 + $0x60] sm:$0xff]
    %v304 = vld [vmem:[#allocation7 + $0x68] sm:$0xff]
    %v305 = vld [vmem:[#allocation7 + $0x70] sm:$0xff]
    %v306 = vld [vmem:[#allocation7 + $0x78] sm:$0xff]
    %v307 = vld [vmem:[%s7 + $0x2] sm:$0x1]
    %v308 = vperm.slane %v307, 0
    %309 = vmatpush.msra.mxu0 %v306
    %310 = vmatpush.msra.mxu0 %v305
    %311 = vmatpush.msra.mxu0 %v304
    %312 = vmatpush.msra.mxu0 %v303
    %313 = vmatpush.msra.mxu0 %v302
    %314 = vmatpush.msra.mxu0 %v301
    %315 = vmatpush.msra.mxu0 %v300
    %316 = vmatpush.msra.mxu0 %v299
    %317 = vmatpush.msra.mxu0 %v298
    %318 = vmatpush.msra.mxu0 %v297
    %319 = vmatpush.msra.mxu0 %v296
    %320 = vmatpush.msra.mxu0 %v295
    %321 = vmatpush.msra.mxu0 %v294
    %322 = vmatpush.msra.mxu0 %v293
    %323 = vmatpush.msra.mxu0 %v292
    %324 = vmatpush.msra.mxu0 %v291
    %325 = vmatmul.f32.gmra.mxu0 %v275
    %v326 = vpop.f32.mrf.mxu0
    %v327 = vadd.f32 %v308, %v326
    %328 = vmatmul.f32.gmra.mxu0 %v290
    %v329 = vpop.f32.mrf.mxu0
    %v330 = vadd.f32 %v308, %v329
    %331 = vdwg.mxu0
    %v332 = vld [vmem:[#allocation8] sm:$0xff]
    %v333 = vld [vmem:[#allocation8 + $0x8] sm:$0xff]
    %v334 = vld [vmem:[#allocation8 + $0x10] sm:$0xff]
    %v335 = vld [vmem:[#allocation8 + $0x18] sm:$0xff]
    %v336 = vld [vmem:[#allocation8 + $0x20] sm:$0xff]
    %v337 = vld [vmem:[#allocation8 + $0x28] sm:$0xff]
    %v338 = vld [vmem:[#allocation8 + $0x30] sm:$0xff]
    %v339 = vld [vmem:[#allocation8 + $0x38] sm:$0xff]
    %v340 = vld [vmem:[#allocation8 + $0x40] sm:$0xff]
    %v341 = vld [vmem:[#allocation8 + $0x48] sm:$0xff]
    %v342 = vld [vmem:[#allocation8 + $0x50] sm:$0xff]
    %v343 = vld [vmem:[#allocation8 + $0x58] sm:$0xff]
    %v344 = vld [vmem:[#allocation8 + $0x60] sm:$0xff]
    %v345 = vld [vmem:[#allocation8 + $0x68] sm:$0xff]
    %v346 = vld [vmem:[#allocation8 + $0x70] sm:$0xff]
    %v347 = vld [vmem:[#allocation8 + $0x78] sm:$0xff]
    %v348 = vld [vmem:[%s7 + $0x3] sm:$0x1]
    %v349 = vperm.slane %v348, 0
    %350 = vmatpush.msra.mxu0 %v347
    %351 = vmatpush.msra.mxu0 %v346
    %352 = vmatpush.msra.mxu0 %v345
    %353 = vmatpush.msra.mxu0 %v344
    %354 = vmatpush.msra.mxu0 %v343
    %355 = vmatpush.msra.mxu0 %v342
    %356 = vmatpush.msra.mxu0 %v341
    %357 = vmatpush.msra.mxu0 %v340
    %358 = vmatpush.msra.mxu0 %v339
    %359 = vmatpush.msra.mxu0 %v338
    %360 = vmatpush.msra.mxu0 %v337
    %361 = vmatpush.msra.mxu0 %v336
    %362 = vmatpush.msra.mxu0 %v335
    %363 = vmatpush.msra.mxu0 %v334
    %364 = vmatpush.msra.mxu0 %v333
    %365 = vmatpush.msra.mxu0 %v332
    %366 = vmatmul.f32.gmra.mxu0 %v327
    %v367 = vpop.f32.mrf.mxu0
    %v368 = vadd.f32 %v349, %v367
    %369 = vmatmul.f32.gmra.mxu0 %v330
    %v370 = vpop.f32.mrf.mxu0
    %v371 = vadd.f32 %v349, %v370
    %372 = vdwg.mxu0
    %v373 = vld [vmem:[#allocation10] sm:$0xff]
    %v374 = vld [vmem:[#allocation10 + $0x8] sm:$0xff]
    %v375 = vld [vmem:[#allocation10 + $0x10] sm:$0xff]
    %v376 = vld [vmem:[#allocation10 + $0x18] sm:$0xff]
    %v377 = vld [vmem:[#allocation10 + $0x20] sm:$0xff]
    %v378 = vld [vmem:[#allocation10 + $0x28] sm:$0xff]
    %v379 = vld [vmem:[#allocation10 + $0x30] sm:$0xff]
    %v380 = vld [vmem:[#allocation10 + $0x38] sm:$0xff]
    %v381 = vld [vmem:[#allocation10 + $0x40] sm:$0xff]
    %v382 = vld [vmem:[#allocation10 + $0x48] sm:$0xff]
    %v383 = vld [vmem:[#allocation10 + $0x50] sm:$0xff]
    %v384 = vld [vmem:[#allocation10 + $0x58] sm:$0xff]
    %v385 = vld [vmem:[#allocation10 + $0x60] sm:$0xff]
    %v386 = vld [vmem:[#allocation10 + $0x68] sm:$0xff]
    %v387 = vld [vmem:[#allocation10 + $0x70] sm:$0xff]
    %v388 = vld [vmem:[#allocation10 + $0x78] sm:$0xff]
    %v389 = vld [vmem:[%s7 + $0x4] sm:$0x1]
    %v390 = vperm.slane %v389, 0
    %391 = vmatpush.msra.mxu0 %v388
    %392 = vmatpush.msra.mxu0 %v387
    %393 = vmatpush.msra.mxu0 %v386
    %394 = vmatpush.msra.mxu0 %v385
    %395 = vmatpush.msra.mxu0 %v384
    %396 = vmatpush.msra.mxu0 %v383
    %397 = vmatpush.msra.mxu0 %v382
    %398 = vmatpush.msra.mxu0 %v381
    %399 = vmatpush.msra.mxu0 %v380
    %400 = vmatpush.msra.mxu0 %v379
    %401 = vmatpush.msra.mxu0 %v378
    %402 = vmatpush.msra.mxu0 %v377
    %403 = vmatpush.msra.mxu0 %v376
    %404 = vmatpush.msra.mxu0 %v375
    %405 = vmatpush.msra.mxu0 %v374
    %406 = vmatpush.msra.mxu0 %v373
    %407 = vmatmul.f32.gmra.mxu0 %v368
    %v408 = vpop.f32.mrf.mxu0
    %v409 = vadd.f32 %v390, %v408
    %410 = vmatmul.f32.gmra.mxu0 %v371
    %v411 = vpop.f32.mrf.mxu0
    %v412 = vadd.f32 %v390, %v411
    %413 = vdwg.mxu0
    %v414 = vxor.u32 %v409, 2147483648
    %v415 = vxor.u32 %v412, 2147483648
    %v416 = vmul.f32 %v414, 1.442695
    %v417 = vpow.pop %v416
    %v418 = vmul.f32 %v415, 1.442695
    %v419 = vpow.pop %v418
    %v420 = vadd.f32 %v417, 1.0
    %v421 = vadd.f32 %v419, 1.0
    %v422 = vrcp.pop %v420
    %v423 = vmul.f32 %v420, %v422
    %v424 = vsub.f32 1.0, %v423
    %v425 = vmul.f32 %v422, %v424
    %v426 = vadd.f32 %v422, %v425
    %vm427 = vweird.f32 %v420
    %vm428 = vweird.f32 %v422
    %vm429 = vmor %vm427, %vm428
    %v430 = vsel %vm429, %v422, %v426
    %v431 = vand.u32 2147483647, %v420
    %vm432 = vcmp.eq.f32.partialorder %v431, 8.507059e+37
    %v433 = vand.u32 %v420, 2147483648
    %v434 = vor.u32 1.1754944e-38, %v433
    %v435 = vsel %vm432, %v434, %v430
    %v436 = vmul.f32 1.0, %v435
    %v437 = vrcp.pop %v421
    %v438 = vmul.f32 %v421, %v437
    %v439 = vsub.f32 1.0, %v438
    %v440 = vmul.f32 %v437, %v439
    %v441 = vadd.f32 %v437, %v440
    %vm442 = vweird.f32 %v421
    %vm443 = vweird.f32 %v437
    %vm444 = vmor %vm442, %vm443
    %v445 = vsel %vm444, %v437, %v441
    %v446 = vand.u32 2147483647, %v421
    %vm447 = vcmp.eq.f32.partialorder %v446, 8.507059e+37
    %v448 = vand.u32 %v421, 2147483648
    %v449 = vor.u32 1.1754944e-38, %v448
    %v450 = vsel %vm447, %v449, %v445
    %v451 = vmul.f32 1.0, %v450
    %v452 = vld [vmem:[#allocation11] sm:$0xff]
    %v453 = vld [vmem:[#allocation11 + $0x8] sm:$0xff]
    %v454 = vld [vmem:[#allocation11 + $0x10] sm:$0xff]
    %v455 = vld [vmem:[#allocation11 + $0x18] sm:$0xff]
    %v456 = vld [vmem:[#allocation11 + $0x20] sm:$0xff]
    %v457 = vld [vmem:[#allocation11 + $0x28] sm:$0xff]
    %v458 = vld [vmem:[#allocation11 + $0x30] sm:$0xff]
    %v459 = vld [vmem:[#allocation11 + $0x38] sm:$0xff]
    %v460 = vld [vmem:[#allocation11 + $0x40] sm:$0xff]
    %v461 = vld [vmem:[#allocation11 + $0x48] sm:$0xff]
    %v462 = vld [vmem:[#allocation11 + $0x50] sm:$0xff]
    %v463 = vld [vmem:[#allocation11 + $0x58] sm:$0xff]
    %v464 = vld [vmem:[#allocation11 + $0x60] sm:$0xff]
    %v465 = vld [vmem:[#allocation11 + $0x68] sm:$0xff]
    %v466 = vld [vmem:[#allocation11 + $0x70] sm:$0xff]
    %v467 = vld [vmem:[#allocation11 + $0x78] sm:$0xff]
    %v468 = vld [vmem:[%s7 + $0x5] sm:$0x1]
    %v469 = vperm.slane %v468, 0
    %470 = vmatpush.msra.mxu0 %v467
    %471 = vmatpush.msra.mxu0 %v466
    %472 = vmatpush.msra.mxu0 %v465
    %473 = vmatpush.msra.mxu0 %v464
    %474 = vmatpush.msra.mxu0 %v463
    %475 = vmatpush.msra.mxu0 %v462
    %476 = vmatpush.msra.mxu0 %v461
    %477 = vmatpush.msra.mxu0 %v460
    %478 = vmatpush.msra.mxu0 %v459
    %479 = vmatpush.msra.mxu0 %v458
    %480 = vmatpush.msra.mxu0 %v457
    %481 = vmatpush.msra.mxu0 %v456
    %482 = vmatpush.msra.mxu0 %v455
    %483 = vmatpush.msra.mxu0 %v454
    %484 = vmatpush.msra.mxu0 %v453
    %485 = vmatpush.msra.mxu0 %v452
    %486 = vmatmul.f32.gmra.mxu0 %v436
    %v487 = vpop.f32.mrf.mxu0
    %v488 = vadd.f32 %v469, %v487
    %489 = vmatmul.f32.gmra.mxu0 %v451
    %v490 = vpop.f32.mrf.mxu0
    %v491 = vadd.f32 %v469, %v490
    %492 = vdwg.mxu0
    %v493 = vxor.u32 %v488, 2147483648
    %v494 = vxor.u32 %v491, 2147483648
    %v495 = vmul.f32 %v493, 1.442695
    %v496 = vpow.pop %v495
    %v497 = vmul.f32 %v494, 1.442695
    %v498 = vpow.pop %v497
    %v499 = vadd.f32 %v496, 1.0
    %v500 = vadd.f32 %v498, 1.0
    %v501 = vrcp.pop %v499
    %v502 = vmul.f32 %v499, %v501
    %v503 = vsub.f32 1.0, %v502
    %v504 = vmul.f32 %v501, %v503
    %v505 = vadd.f32 %v501, %v504
    %vm506 = vweird.f32 %v499
    %vm507 = vweird.f32 %v501
    %vm508 = vmor %vm506, %vm507
    %v509 = vsel %vm508, %v501, %v505
    %v510 = vand.u32 2147483647, %v499
    %vm511 = vcmp.eq.f32.partialorder %v510, 8.507059e+37
    %v512 = vand.u32 %v499, 2147483648
    %v513 = vor.u32 1.1754944e-38, %v512
    %v514 = vsel %vm511, %v513, %v509
    %v515 = vmul.f32 1.0, %v514
    %v516 = vrcp.pop %v500
    %v517 = vmul.f32 %v500, %v516
    %v518 = vsub.f32 1.0, %v517
    %v519 = vmul.f32 %v516, %v518
    %v520 = vadd.f32 %v516, %v519
    %vm521 = vweird.f32 %v500
    %vm522 = vweird.f32 %v516
    %vm523 = vmor %vm521, %vm522
    %v524 = vsel %vm523, %v516, %v520
    %v525 = vand.u32 2147483647, %v500
    %vm526 = vcmp.eq.f32.partialorder %v525, 8.507059e+37
    %v527 = vand.u32 %v500, 2147483648
    %v528 = vor.u32 1.1754944e-38, %v527
    %v529 = vsel %vm526, %v528, %v524
    %v530 = vmul.f32 1.0, %v529
    %531 = vst [vmem:[%s8] sm:$0xff] %v515
    %532 = vst [vmem:[%s8 + $0x8] sm:$0xff] %v530
    // Predicated region
    $region58: #{_autoencoder_forward_impl.1} parent=1 // pred_check
      _
    $region59: #{_autoencoder_forward_impl.1} parent=1 // pred_check_branch
      %534 = sbr.rel (0) target = $region61
    $region60: #{_autoencoder_forward_impl.1} parent=1 // pred_region
      _
    $region61: #{_autoencoder_forward_impl.1} parent=1 // pred_fallthru
      _
    // Predicated region
    $region62: #{_autoencoder_forward_impl.1} parent=1 // pred_check
      _
    $region63: #{_autoencoder_forward_impl.1} parent=1 // pred_check_branch
      %536 = sbr.rel (0) target = $region65
    $region64: #{_autoencoder_forward_impl.1} parent=1 // pred_region
      _
    $region65: #{_autoencoder_forward_impl.1} parent=1 // pred_fallthru
      _
    %537 = vsyncpa [#allocation4], 1
    %538 = vsyncpa [#allocation6], 1
    %539 = vsyncpa [#allocation9], 1
    %540 = vsyncpa [#allocation12], 1

// kernel: _autoencoder_forward_impl.1
$region0: #{_autoencoder_forward_impl.1}
  #allocation0 [shape = 'u32[]', space=smem, size = 0x4, offset = 0x4, fixed_abs, tag = 'smem constant byte address 0x4 - core index']
  #allocation1 [shape = 'u32[72,128]{1,0:T(1,128)}', space=vmem, size = 0x9000, scoped, tag = 'internal scratch']
  #allocation2 [shape = 'f32[16,128]{1,0:T(8,128)}', space=vmem, size = 0x2000, scoped, tag = 'scratch operand']
  %s0 = inlined_call_operand.vmem [shape: f32[16,16], index: 0, kind: input, shape index: {}]
  %s1 = inlined_call_operand.hbm [shape: f32[128,128], index: 1, kind: input, shape index: {}]
  %s2 = inlined_call_operand.hbm [shape: f32[128,128], index: 2, kind: input, shape index: {}]
  %s3 = inlined_call_operand.hbm [shape: f32[128,128], index: 3, kind: input, shape index: {}]
  %s4 = inlined_call_operand.hbm [shape: f32[128,128], index: 4, kind: input, shape index: {}]
  %s5 = inlined_call_operand.hbm [shape: f32[128,128], index: 5, kind: input, shape index: {}]
  %s6 = inlined_call_operand.hbm [shape: f32[128,128], index: 6, kind: input, shape index: {}]
  %s7 = inlined_call_operand.vmem [shape: f32[6,128], index: 7, kind: input, shape index: {}]
  %s8 = inlined_call_operand.vmem [shape: f32[16,128], index: 8, kind: output, shape index: {}]
  %s9 = sld [smem:[#allocation0]]
  $region66: #{_autoencoder_forward_impl.1} parent=0
    _
  %s11 = ssub.s32 1, %s9
  %s12 = scalar_select 0, %s11, %s9
  $region1: #{_autoencoder_forward_impl.1} parent=0
    #allocation3 [shape = 'u8[65536]{0}', space=vmem, size = 0x10000, scoped, tag = 'input window, operand 1, single buffered']
    #allocation4 [shape = 's32[1]{0}', space=sflag, size = 0x4, scoped, tag = 'scoped memory for _autoencoder_forward_impl.1']
    #allocation5 [shape = 'u8[65536]{0}', space=vmem, size = 0x10000, scoped, tag = 'input window, operand 2, single buffered']
    #allocation6 [shape = 's32[1]{0}', space=sflag, size = 0x4, scoped, tag = 'scoped memory for _autoencoder_forward_impl.1']
    #allocation7 [shape = 'u8[65536]{0}', space=vmem, size = 0x10000, scoped, tag = 'input window, operand 3, single buffered']
    #allocation8 [shape = 'u8[65536]{0}', space=vmem, size = 0x10000, scoped, tag = 'input window, operand 4, single buffered']
    #allocation9 [shape = 's32[1]{0}', space=sflag, size = 0x4, scoped, tag = 'scoped memory for _autoencoder_forward_impl.1']
    #allocation10 [shape = 'u8[65536]{0}', space=vmem, size = 0x10000, scoped, tag = 'input window, operand 5, single buffered']
    #allocation11 [shape = 'u8[65536]{0}', space=vmem, size = 0x10000, scoped, tag = 'input window, operand 6, single buffered']
    #allocation12 [shape = 's32[1]{0}', space=sflag, size = 0x4, scoped, tag = 'scoped memory for _autoencoder_forward_impl.1']
    %13 = vsyncpa [#allocation4], 0
    %14 = vsyncpa [#allocation6], 0
    %15 = vsyncpa [#allocation9], 0
    %16 = vsyncpa [#allocation12], 0
    // Predicated region
    $region2: #{_autoencoder_forward_impl.1} parent=1 // pred_check
      _
    $region3: #{_autoencoder_forward_impl.1} parent=1 // pred_check_branch
      %18 = sbr.rel (0) target = $region5
    $region4: #{_autoencoder_forward_impl.1} parent=1 // pred_region
      _
    $region5: #{_autoencoder_forward_impl.1} parent=1 // pred_fallthru
      _
    // Predicated region
    $region6: #{_autoencoder_forward_impl.1} parent=1 // pred_check
      _
    $region7: #{_autoencoder_forward_impl.1} parent=1 // pred_check_branch
      %20 = sbr.rel (0) target = $region9
    $region8: #{_autoencoder_forward_impl.1} parent=1 // pred_region
      %22 = vsyncadd [#allocation4], 0
      %s23 = sshll.u32 %s1, 4
      %s24 = int_to_ptr.hbm [resolvable:$true] %s23
      %s25 = sshll.u32 [#allocation3], 4
      %s26 = int_to_ptr.vmem [resolvable:$true] %s25
      %31 = dma.hbm_to_vmem [thread:$0]  %s24, 2048, %s26, [#allocation4], 128, 128, 8
    $region9: #{_autoencoder_forward_impl.1} parent=1 // pred_fallthru
      _
    // Predicated region
    $region10: #{_autoencoder_forward_impl.1} parent=1 // pred_check
      _
    $region11: #{_autoencoder_forward_impl.1} parent=1 // pred_check_branch
      %33 = sbr.rel (0) target = $region13
    $region12: #{_autoencoder_forward_impl.1} parent=1 // pred_region
      %35 = vsyncadd [#allocation6], 0
      %s36 = sshll.u32 %s2, 4
      %s37 = int_to_ptr.hbm [resolvable:$true] %s36
      %s38 = sshll.u32 [#allocation5], 4
      %s39 = int_to_ptr.vmem [resolvable:$true] %s38
      %44 = dma.hbm_to_vmem [thread:$0]  %s37, 2048, %s39, [#allocation6], 128, 128, 8
    $region13: #{_autoencoder_forward_impl.1} parent=1 // pred_fallthru
      _
    // Predicated region
    $region14: #{_autoencoder_forward_impl.1} parent=1 // pred_check
      _
    $region15: #{_autoencoder_forward_impl.1} parent=1 // pred_check_branch
      %46 = sbr.rel (0) target = $region17
    $region16: #{_autoencoder_forward_impl.1} parent=1 // pred_region
      %48 = vsyncadd [#allocation6], 0
      %s49 = sshll.u32 %s3, 4
      %s50 = int_to_ptr.hbm [resolvable:$true] %s49
      %s51 = sshll.u32 [#allocation7], 4
      %s52 = int_to_ptr.vmem [resolvable:$true] %s51
      %57 = dma.hbm_to_vmem [thread:$0]  %s50, 2048, %s52, [#allocation6], 128, 128, 8
    $region17: #{_autoencoder_forward_impl.1} parent=1 // pred_fallthru
      _
    // Predicated region
    $region18: #{_autoencoder_forward_impl.1} parent=1 // pred_check
      _
    $region19: #{_autoencoder_forward_impl.1} parent=1 // pred_check_branch
      %59 = sbr.rel (0) target = $region21
    $region20: #{_autoencoder_forward_impl.1} parent=1 // pred_region
      %61 = vsyncadd [#allocation9], 0
      %s62 = sshll.u32 %s4, 4
      %s63 = int_to_ptr.hbm [resolvable:$true] %s62
      %s64 = sshll.u32 [#allocation8], 4
      %s65 = int_to_ptr.vmem [resolvable:$true] %s64
      %70 = dma.hbm_to_vmem [thread:$0]  %s63, 2048, %s65, [#allocation9], 128, 128, 8
    $region21: #{_autoencoder_forward_impl.1} parent=1 // pred_fallthru
      _
    // Predicated region
    $region22: #{_autoencoder_forward_impl.1} parent=1 // pred_check
      _
    $region23: #{_autoencoder_forward_impl.1} parent=1 // pred_check_branch
      %72 = sbr.rel (0) target = $region25
    $region24: #{_autoencoder_forward_impl.1} parent=1 // pred_region
      %74 = vsyncadd [#allocation9], 0
      %s75 = sshll.u32 %s5, 4
      %s76 = int_to_ptr.hbm [resolvable:$true] %s75
      %s77 = sshll.u32 [#allocation10], 4
      %s78 = int_to_ptr.vmem [resolvable:$true] %s77
      %83 = dma.hbm_to_vmem [thread:$0]  %s76, 2048, %s78, [#allocation9], 128, 128, 8
    $region25: #{_autoencoder_forward_impl.1} parent=1 // pred_fallthru
      _
    // Predicated region
    $region26: #{_autoencoder_forward_impl.1} parent=1 // pred_check
      _
    $region27: #{_autoencoder_forward_impl.1} parent=1 // pred_check_branch
      %85 = sbr.rel (0) target = $region29
    $region28: #{_autoencoder_forward_impl.1} parent=1 // pred_region
      %87 = vsyncadd [#allocation12], 0
      %s88 = sshll.u32 %s6, 4
      %s89 = int_to_ptr.hbm [resolvable:$true] %s88
      %s90 = sshll.u32 [#allocation11], 4
      %s91 = int_to_ptr.vmem [resolvable:$true] %s90
      %96 = dma.hbm_to_vmem [thread:$0]  %s89, 2048, %s91, [#allocation12], 128, 128, 8
    $region29: #{_autoencoder_forward_impl.1} parent=1 // pred_fallthru
      _
    // Predicated region
    $region30: #{_autoencoder_forward_impl.1} parent=1 // pred_check
      _
    $region31: #{_autoencoder_forward_impl.1} parent=1 // pred_check_branch
      %98 = sbr.rel (0) target = $region33
    $region32: #{_autoencoder_forward_impl.1} parent=1 // pred_region
      _
    $region33: #{_autoencoder_forward_impl.1} parent=1 // pred_fallthru
      _
    // Predicated region
    $region34: #{_autoencoder_forward_impl.1} parent=1 // pred_check
      _
    $region35: #{_autoencoder_forward_impl.1} parent=1 // pred_check_branch
      %100 = sbr.rel (0) target = $region37
    $region36: #{_autoencoder_forward_impl.1} parent=1 // pred_region
      %102 = dma.done [#allocation4], 2048
    $region37: #{_autoencoder_forward_impl.1} parent=1 // pred_fallthru
      _
    // Predicated region
    $region38: #{_autoencoder_forward_impl.1} parent=1 // pred_check
      _
    $region39: #{_autoencoder_forward_impl.1} parent=1 // pred_check_branch
      %104 = sbr.rel (0) target = $region41
    $region40: #{_autoencoder_forward_impl.1} parent=1 // pred_region
      %106 = dma.done [#allocation6], 2048
    $region41: #{_autoencoder_forward_impl.1} parent=1 // pred_fallthru
      _
    // Predicated region
    $region42: #{_autoencoder_forward_impl.1} parent=1 // pred_check
      _
    $region43: #{_autoencoder_forward_impl.1} parent=1 // pred_check_branch
      %108 = sbr.rel (0) target = $region45
    $region44: #{_autoencoder_forward_impl.1} parent=1 // pred_region
      %110 = dma.done [#allocation6], 2048
    $region45: #{_autoencoder_forward_impl.1} parent=1 // pred_fallthru
      _
    // Predicated region
    $region46: #{_autoencoder_forward_impl.1} parent=1 // pred_check
      _
    $region47: #{_autoencoder_forward_impl.1} parent=1 // pred_check_branch
      %112 = sbr.rel (0) target = $region49
    $region48: #{_autoencoder_forward_impl.1} parent=1 // pred_region
      %114 = dma.done [#allocation9], 2048
    $region49: #{_autoencoder_forward_impl.1} parent=1 // pred_fallthru
      _
    // Predicated region
    $region50: #{_autoencoder_forward_impl.1} parent=1 // pred_check
      _
    $region51: #{_autoencoder_forward_impl.1} parent=1 // pred_check_branch
      %116 = sbr.rel (0) target = $region53
    $region52: #{_autoencoder_forward_impl.1} parent=1 // pred_region
      %118 = dma.done [#allocation9], 2048
    $region53: #{_autoencoder_forward_impl.1} parent=1 // pred_fallthru
      _
    // Predicated region
    $region54: #{_autoencoder_forward_impl.1} parent=1 // pred_check
      _
    $region55: #{_autoencoder_forward_impl.1} parent=1 // pred_check_branch
      %120 = sbr.rel (0) target = $region57
    $region56: #{_autoencoder_forward_impl.1} parent=1 // pred_region
      %122 = dma.done [#allocation12], 2048
    $region57: #{_autoencoder_forward_impl.1} parent=1 // pred_fallthru
      _
    %vm123 = vcmask 1047680
    %124 = vst.msk [vmem:[#allocation2] sm:$0xff] %vm123, 0.0
    %125 = vst.msk [vmem:[#allocation2 + $0x8] sm:$0xff] %vm123, 0.0
    %v126 = vld [vmem:[%s0] sm:$0xff]
    %v127 = vld [vmem:[%s0 + $0x8] sm:$0xff]
    %vm128 = vcmask 130048
    %129 = vst.msk [vmem:[#allocation2] sm:$0xff] %vm128, %v126
    %130 = vst.msk [vmem:[#allocation2 + $0x8] sm:$0xff] %vm128, %v127
    %v131 = vld [vmem:[#allocation2] sm:$0xff]
    %v132 = vld [vmem:[#allocation2 + $0x8] sm:$0xff]
    %v133 = vld [vmem:[#allocation3] sm:$0xff]
    %v134 = vld [vmem:[#allocation3 + $0x8] sm:$0xff]
    %v135 = vld [vmem:[#allocation3 + $0x10] sm:$0xff]
    %v136 = vld [vmem:[#allocation3 + $0x18] sm:$0xff]
    %v137 = vld [vmem:[#allocation3 + $0x20] sm:$0xff]
    %v138 = vld [vmem:[#allocation3 + $0x28] sm:$0xff]
    %v139 = vld [vmem:[#allocation3 + $0x30] sm:$0xff]
    %v140 = vld [vmem:[#allocation3 + $0x38] sm:$0xff]
    %v141 = vld [vmem:[#allocation3 + $0x40] sm:$0xff]
    %v142 = vld [vmem:[#allocation3 + $0x48] sm:$0xff]
    %v143 = vld [vmem:[#allocation3 + $0x50] sm:$0xff]
    %v144 = vld [vmem:[#allocation3 + $0x58] sm:$0xff]
    %v145 = vld [vmem:[#allocation3 + $0x60] sm:$0xff]
    %v146 = vld [vmem:[#allocation3 + $0x68] sm:$0xff]
    %v147 = vld [vmem:[#allocation3 + $0x70] sm:$0xff]
    %v148 = vld [vmem:[#allocation3 + $0x78] sm:$0xff]
    %v149 = vld [vmem:[%s7] sm:$0x1]
    %v150 = vperm.slane %v149, 0
    %151 = vmatpush.msra.mxu0 %v148
    %152 = vmatpush.msra.mxu0 %v147
    %153 = vmatpush.msra.mxu0 %v146
    %154 = vmatpush.msra.mxu0 %v145
    %155 = vmatpush.msra.mxu0 %v144
    %156 = vmatpush.msra.mxu0 %v143
    %157 = vmatpush.msra.mxu0 %v142
    %158 = vmatpush.msra.mxu0 %v141
    %159 = vmatpush.msra.mxu0 %v140
    %160 = vmatpush.msra.mxu0 %v139
    %161 = vmatpush.msra.mxu0 %v138
    %162 = vmatpush.msra.mxu0 %v137
    %163 = vmatpush.msra.mxu0 %v136
    %164 = vmatpush.msra.mxu0 %v135
    %165 = vmatpush.msra.mxu0 %v134
    %166 = vmatpush.msra.mxu0 %v133
    %167 = vmatmul.f32.gmra.mxu0 %v131
    %v168 = vpop.f32.mrf.mxu0
    %v169 = vadd.f32 %v150, %v168
    %170 = vmatmul.f32.gmra.mxu0 %v132
    %v171 = vpop.f32.mrf.mxu0
    %v172 = vadd.f32 %v150, %v171
    %173 = vdwg.mxu0
    %v174 = vxor.u32 %v169, 2147483648
    %v175 = vxor.u32 %v172, 2147483648
    %v176 = vmul.f32 %v174, 1.442695
    %v177 = vpow.pop %v176
    %v178 = vmul.f32 %v175, 1.442695
    %v179 = vpow.pop %v178
    %v180 = vadd.f32 %v177, 1.0
    %v181 = vadd.f32 %v179, 1.0
    %v182 = vrcp.pop %v180
    %v183 = vmul.f32 %v180, %v182
    %v184 = vsub.f32 1.0, %v183
    %v185 = vmul.f32 %v182, %v184
    %v186 = vadd.f32 %v182, %v185
    %vm187 = vweird.f32 %v180
    %vm188 = vweird.f32 %v182
    %vm189 = vmor %vm187, %vm188
    %v190 = vsel %vm189, %v182, %v186
    %v191 = vand.u32 2147483647, %v180
    %vm192 = vcmp.eq.f32.partialorder %v191, 8.507059e+37
    %v193 = vand.u32 %v180, 2147483648
    %v194 = vor.u32 1.1754944e-38, %v193
    %v195 = vsel %vm192, %v194, %v190
    %v196 = vmul.f32 1.0, %v195
    %v197 = vrcp.pop %v181
    %v198 = vmul.f32 %v181, %v197
    %v199 = vsub.f32 1.0, %v198
    %v200 = vmul.f32 %v197, %v199
    %v201 = vadd.f32 %v197, %v200
    %vm202 = vweird.f32 %v181
    %vm203 = vweird.f32 %v197
    %vm204 = vmor %vm202, %vm203
    %v205 = vsel %vm204, %v197, %v201
    %v206 = vand.u32 2147483647, %v181
    %vm207 = vcmp.eq.f32.partialorder %v206, 8.507059e+37
    %v208 = vand.u32 %v181, 2147483648
    %v209 = vor.u32 1.1754944e-38, %v208
    %v210 = vsel %vm207, %v209, %v205
    %v211 = vmul.f32 1.0, %v210
    %v212 = vld [vmem:[#allocation5] sm:$0xff]
    %v213 = vld [vmem:[#allocation5 + $0x8] sm:$0xff]
    %v214 = vld [vmem:[#allocation5 + $0x10] sm:$0xff]
    %v215 = vld [vmem:[#allocation5 + $0x18] sm:$0xff]
    %v216 = vld [vmem:[#allocation5 + $0x20] sm:$0xff]
    %v217 = vld [vmem:[#allocation5 + $0x28] sm:$0xff]
    %v218 = vld [vmem:[#allocation5 + $0x30] sm:$0xff]
    %v219 = vld [vmem:[#allocation5 + $0x38] sm:$0xff]
    %v220 = vld [vmem:[#allocation5 + $0x40] sm:$0xff]
    %v221 = vld [vmem:[#allocation5 + $0x48] sm:$0xff]
    %v222 = vld [vmem:[#allocation5 + $0x50] sm:$0xff]
    %v223 = vld [vmem:[#allocation5 + $0x58] sm:$0xff]
    %v224 = vld [vmem:[#allocation5 + $0x60] sm:$0xff]
    %v225 = vld [vmem:[#allocation5 + $0x68] sm:$0xff]
    %v226 = vld [vmem:[#allocation5 + $0x70] sm:$0xff]
    %v227 = vld [vmem:[#allocation5 + $0x78] sm:$0xff]
    %v228 = vld [vmem:[%s7 + $0x1] sm:$0x1]
    %v229 = vperm.slane %v228, 0
    %230 = vmatpush.msra.mxu0 %v227
    %231 = vmatpush.msra.mxu0 %v226
    %232 = vmatpush.msra.mxu0 %v225
    %233 = vmatpush.msra.mxu0 %v224
    %234 = vmatpush.msra.mxu0 %v223
    %235 = vmatpush.msra.mxu0 %v222
    %236 = vmatpush.msra.mxu0 %v221
    %237 = vmatpush.msra.mxu0 %v220
    %238 = vmatpush.msra.mxu0 %v219
    %239 = vmatpush.msra.mxu0 %v218
    %240 = vmatpush.msra.mxu0 %v217
    %241 = vmatpush.msra.mxu0 %v216
    %242 = vmatpush.msra.mxu0 %v215
    %243 = vmatpush.msra.mxu0 %v214
    %244 = vmatpush.msra.mxu0 %v213
    %245 = vmatpush.msra.mxu0 %v212
    %246 = vmatmul.f32.gmra.mxu0 %v196
    %v247 = vpop.f32.mrf.mxu0
    %v248 = vadd.f32 %v229, %v247
    %249 = vmatmul.f32.gmra.mxu0 %v211
    %v250 = vpop.f32.mrf.mxu0
    %v251 = vadd.f32 %v229, %v250
    %252 = vdwg.mxu0
    %v253 = vxor.u32 %v248, 2147483648
    %v254 = vxor.u32 %v251, 2147483648
    %v255 = vmul.f32 %v253, 1.442695
    %v256 = vpow.pop %v255
    %v257 = vmul.f32 %v254, 1.442695
    %v258 = vpow.pop %v257
    %v259 = vadd.f32 %v256, 1.0
    %v260 = vadd.f32 %v258, 1.0
    %v261 = vrcp.pop %v259
    %v262 = vmul.f32 %v259, %v261
    %v263 = vsub.f32 1.0, %v262
    %v264 = vmul.f32 %v261, %v263
    %v265 = vadd.f32 %v261, %v264
    %vm266 = vweird.f32 %v259
    %vm267 = vweird.f32 %v261
    %vm268 = vmor %vm266, %vm267
    %v269 = vsel %vm268, %v261, %v265
    %v270 = vand.u32 2147483647, %v259
    %vm271 = vcmp.eq.f32.partialorder %v270, 8.507059e+37
    %v272 = vand.u32 %v259, 2147483648
    %v273 = vor.u32 1.1754944e-38, %v272
    %v274 = vsel %vm271, %v273, %v269
    %v275 = vmul.f32 1.0, %v274
    %v276 = vrcp.pop %v260
    %v277 = vmul.f32 %v260, %v276
    %v278 = vsub.f32 1.0, %v277
    %v279 = vmul.f32 %v276, %v278
    %v280 = vadd.f32 %v276, %v279
    %vm281 = vweird.f32 %v260
    %vm282 = vweird.f32 %v276
    %vm283 = vmor %vm281, %vm282
    %v284 = vsel %vm283, %v276, %v280
    %v285 = vand.u32 2147483647, %v260
    %vm286 = vcmp.eq.f32.partialorder %v285, 8.507059e+37
    %v287 = vand.u32 %v260, 2147483648
    %v288 = vor.u32 1.1754944e-38, %v287
    %v289 = vsel %vm286, %v288, %v284
    %v290 = vmul.f32 1.0, %v289
    %v291 = vld [vmem:[#allocation7] sm:$0xff]
    %v292 = vld [vmem:[#allocation7 + $0x8] sm:$0xff]
    %v293 = vld [vmem:[#allocation7 + $0x10] sm:$0xff]
    %v294 = vld [vmem:[#allocation7 + $0x18] sm:$0xff]
    %v295 = vld [vmem:[#allocation7 + $0x20] sm:$0xff]
    %v296 = vld [vmem:[#allocation7 + $0x28] sm:$0xff]
    %v297 = vld [vmem:[#allocation7 + $0x30] sm:$0xff]
    %v298 = vld [vmem:[#allocation7 + $0x38] sm:$0xff]
    %v299 = vld [vmem:[#allocation7 + $0x40] sm:$0xff]
    %v300 = vld [vmem:[#allocation7 + $0x48] sm:$0xff]
    %v301 = vld [vmem:[#allocation7 + $0x50] sm:$0xff]
    %v302 = vld [vmem:[#allocation7 + $0x58] sm:$0xff]
    %v303 = vld [vmem:[#allocation7 + $0x60] sm:$0xff]
    %v304 = vld [vmem:[#allocation7 + $0x68] sm:$0xff]
    %v305 = vld [vmem:[#allocation7 + $0x70] sm:$0xff]
    %v306 = vld [vmem:[#allocation7 + $0x78] sm:$0xff]
    %v307 = vld [vmem:[%s7 + $0x2] sm:$0x1]
    %v308 = vperm.slane %v307, 0
    %309 = vmatpush.msra.mxu0 %v306
    %310 = vmatpush.msra.mxu0 %v305
    %311 = vmatpush.msra.mxu0 %v304
    %312 = vmatpush.msra.mxu0 %v303
    %313 = vmatpush.msra.mxu0 %v302
    %314 = vmatpush.msra.mxu0 %v301
    %315 = vmatpush.msra.mxu0 %v300
    %316 = vmatpush.msra.mxu0 %v299
    %317 = vmatpush.msra.mxu0 %v298
    %318 = vmatpush.msra.mxu0 %v297
    %319 = vmatpush.msra.mxu0 %v296
    %320 = vmatpush.msra.mxu0 %v295
    %321 = vmatpush.msra.mxu0 %v294
    %322 = vmatpush.msra.mxu0 %v293
    %323 = vmatpush.msra.mxu0 %v292
    %324 = vmatpush.msra.mxu0 %v291
    %325 = vmatmul.f32.gmra.mxu0 %v275
    %v326 = vpop.f32.mrf.mxu0
    %v327 = vadd.f32 %v308, %v326
    %328 = vmatmul.f32.gmra.mxu0 %v290
    %v329 = vpop.f32.mrf.mxu0
    %v330 = vadd.f32 %v308, %v329
    %331 = vdwg.mxu0
    %v332 = vld [vmem:[#allocation8] sm:$0xff]
    %v333 = vld [vmem:[#allocation8 + $0x8] sm:$0xff]
    %v334 = vld [vmem:[#allocation8 + $0x10] sm:$0xff]
    %v335 = vld [vmem:[#allocation8 + $0x18] sm:$0xff]
    %v336 = vld [vmem:[#allocation8 + $0x20] sm:$0xff]
    %v337 = vld [vmem:[#allocation8 + $0x28] sm:$0xff]
    %v338 = vld [vmem:[#allocation8 + $0x30] sm:$0xff]
    %v339 = vld [vmem:[#allocation8 + $0x38] sm:$0xff]
    %v340 = vld [vmem:[#allocation8 + $0x40] sm:$0xff]
    %v341 = vld [vmem:[#allocation8 + $0x48] sm:$0xff]
    %v342 = vld [vmem:[#allocation8 + $0x50] sm:$0xff]
    %v343 = vld [vmem:[#allocation8 + $0x58] sm:$0xff]
    %v344 = vld [vmem:[#allocation8 + $0x60] sm:$0xff]
    %v345 = vld [vmem:[#allocation8 + $0x68] sm:$0xff]
    %v346 = vld [vmem:[#allocation8 + $0x70] sm:$0xff]
    %v347 = vld [vmem:[#allocation8 + $0x78] sm:$0xff]
    %v348 = vld [vmem:[%s7 + $0x3] sm:$0x1]
    %v349 = vperm.slane %v348, 0
    %350 = vmatpush.msra.mxu0 %v347
    %351 = vmatpush.msra.mxu0 %v346
    %352 = vmatpush.msra.mxu0 %v345
    %353 = vmatpush.msra.mxu0 %v344
    %354 = vmatpush.msra.mxu0 %v343
    %355 = vmatpush.msra.mxu0 %v342
    %356 = vmatpush.msra.mxu0 %v341
    %357 = vmatpush.msra.mxu0 %v340
    %358 = vmatpush.msra.mxu0 %v339
    %359 = vmatpush.msra.mxu0 %v338
    %360 = vmatpush.msra.mxu0 %v337
    %361 = vmatpush.msra.mxu0 %v336
    %362 = vmatpush.msra.mxu0 %v335
    %363 = vmatpush.msra.mxu0 %v334
    %364 = vmatpush.msra.mxu0 %v333
    %365 = vmatpush.msra.mxu0 %v332
    %366 = vmatmul.f32.gmra.mxu0 %v327
    %v367 = vpop.f32.mrf.mxu0
    %v368 = vadd.f32 %v349, %v367
    %369 = vmatmul.f32.gmra.mxu0 %v330
    %v370 = vpop.f32.mrf.mxu0
    %v371 = vadd.f32 %v349, %v370
    %372 = vdwg.mxu0
    %v373 = vld [vmem:[#allocation10] sm:$0xff]
    %v374 = vld [vmem:[#allocation10 + $0x8] sm:$0xff]
    %v375 = vld [vmem:[#allocation10 + $0x10] sm:$0xff]
    %v376 = vld [vmem:[#allocation10 + $0x18] sm:$0xff]
    %v377 = vld [vmem:[#allocation10 + $0x20] sm:$0xff]
    %v378 = vld [vmem:[#allocation10 + $0x28] sm:$0xff]
    %v379 = vld [vmem:[#allocation10 + $0x30] sm:$0xff]
    %v380 = vld [vmem:[#allocation10 + $0x38] sm:$0xff]
    %v381 = vld [vmem:[#allocation10 + $0x40] sm:$0xff]
    %v382 = vld [vmem:[#allocation10 + $0x48] sm:$0xff]
    %v383 = vld [vmem:[#allocation10 + $0x50] sm:$0xff]
    %v384 = vld [vmem:[#allocation10 + $0x58] sm:$0xff]
    %v385 = vld [vmem:[#allocation10 + $0x60] sm:$0xff]
    %v386 = vld [vmem:[#allocation10 + $0x68] sm:$0xff]
    %v387 = vld [vmem:[#allocation10 + $0x70] sm:$0xff]
    %v388 = vld [vmem:[#allocation10 + $0x78] sm:$0xff]
    %v389 = vld [vmem:[%s7 + $0x4] sm:$0x1]
    %v390 = vperm.slane %v389, 0
    %391 = vmatpush.msra.mxu0 %v388
    %392 = vmatpush.msra.mxu0 %v387
    %393 = vmatpush.msra.mxu0 %v386
    %394 = vmatpush.msra.mxu0 %v385
    %395 = vmatpush.msra.mxu0 %v384
    %396 = vmatpush.msra.mxu0 %v383
    %397 = vmatpush.msra.mxu0 %v382
    %398 = vmatpush.msra.mxu0 %v381
    %399 = vmatpush.msra.mxu0 %v380
    %400 = vmatpush.msra.mxu0 %v379
    %401 = vmatpush.msra.mxu0 %v378
    %402 = vmatpush.msra.mxu0 %v377
    %403 = vmatpush.msra.mxu0 %v376
    %404 = vmatpush.msra.mxu0 %v375
    %405 = vmatpush.msra.mxu0 %v374
    %406 = vmatpush.msra.mxu0 %v373
    %407 = vmatmul.f32.gmra.mxu0 %v368
    %v408 = vpop.f32.mrf.mxu0
    %v409 = vadd.f32 %v390, %v408
    %410 = vmatmul.f32.gmra.mxu0 %v371
    %v411 = vpop.f32.mrf.mxu0
    %v412 = vadd.f32 %v390, %v411
    %413 = vdwg.mxu0
    %v414 = vxor.u32 %v409, 2147483648
    %v415 = vxor.u32 %v412, 2147483648
    %v416 = vmul.f32 %v414, 1.442695
    %v417 = vpow.pop %v416
    %v418 = vmul.f32 %v415, 1.442695
    %v419 = vpow.pop %v418
    %v420 = vadd.f32 %v417, 1.0
    %v421 = vadd.f32 %v419, 1.0
    %v422 = vrcp.pop %v420
    %v423 = vmul.f32 %v420, %v422
    %v424 = vsub.f32 1.0, %v423
    %v425 = vmul.f32 %v422, %v424
    %v426 = vadd.f32 %v422, %v425
    %vm427 = vweird.f32 %v420
    %vm428 = vweird.f32 %v422
    %vm429 = vmor %vm427, %vm428
    %v430 = vsel %vm429, %v422, %v426
    %v431 = vand.u32 2147483647, %v420
    %vm432 = vcmp.eq.f32.partialorder %v431, 8.507059e+37
    %v433 = vand.u32 %v420, 2147483648
    %v434 = vor.u32 1.1754944e-38, %v433
    %v435 = vsel %vm432, %v434, %v430
    %v436 = vmul.f32 1.0, %v435
    %v437 = vrcp.pop %v421
    %v438 = vmul.f32 %v421, %v437
    %v439 = vsub.f32 1.0, %v438
    %v440 = vmul.f32 %v437, %v439
    %v441 = vadd.f32 %v437, %v440
    %vm442 = vweird.f32 %v421
    %vm443 = vweird.f32 %v437
    %vm444 = vmor %vm442, %vm443
    %v445 = vsel %vm444, %v437, %v441
    %v446 = vand.u32 2147483647, %v421
    %vm447 = vcmp.eq.f32.partialorder %v446, 8.507059e+37
    %v448 = vand.u32 %v421, 2147483648
    %v449 = vor.u32 1.1754944e-38, %v448
    %v450 = vsel %vm447, %v449, %v445
    %v451 = vmul.f32 1.0, %v450
    %v452 = vld [vmem:[#allocation11] sm:$0xff]
    %v453 = vld [vmem:[#allocation11 + $0x8] sm:$0xff]
    %v454 = vld [vmem:[#allocation11 + $0x10] sm:$0xff]
    %v455 = vld [vmem:[#allocation11 + $0x18] sm:$0xff]
    %v456 = vld [vmem:[#allocation11 + $0x20] sm:$0xff]
    %v457 = vld [vmem:[#allocation11 + $0x28] sm:$0xff]
    %v458 = vld [vmem:[#allocation11 + $0x30] sm:$0xff]
    %v459 = vld [vmem:[#allocation11 + $0x38] sm:$0xff]
    %v460 = vld [vmem:[#allocation11 + $0x40] sm:$0xff]
    %v461 = vld [vmem:[#allocation11 + $0x48] sm:$0xff]
    %v462 = vld [vmem:[#allocation11 + $0x50] sm:$0xff]
    %v463 = vld [vmem:[#allocation11 + $0x58] sm:$0xff]
    %v464 = vld [vmem:[#allocation11 + $0x60] sm:$0xff]
    %v465 = vld [vmem:[#allocation11 + $0x68] sm:$0xff]
    %v466 = vld [vmem:[#allocation11 + $0x70] sm:$0xff]
    %v467 = vld [vmem:[#allocation11 + $0x78] sm:$0xff]
    %v468 = vld [vmem:[%s7 + $0x5] sm:$0x1]
    %v469 = vperm.slane %v468, 0
    %470 = vmatpush.msra.mxu0 %v467
    %471 = vmatpush.msra.mxu0 %v466
    %472 = vmatpush.msra.mxu0 %v465
    %473 = vmatpush.msra.mxu0 %v464
    %474 = vmatpush.msra.mxu0 %v463
    %475 = vmatpush.msra.mxu0 %v462
    %476 = vmatpush.msra.mxu0 %v461
    %477 = vmatpush.msra.mxu0 %v460
    %478 = vmatpush.msra.mxu0 %v459
    %479 = vmatpush.msra.mxu0 %v458
    %480 = vmatpush.msra.mxu0 %v457
    %481 = vmatpush.msra.mxu0 %v456
    %482 = vmatpush.msra.mxu0 %v455
    %483 = vmatpush.msra.mxu0 %v454
    %484 = vmatpush.msra.mxu0 %v453
    %485 = vmatpush.msra.mxu0 %v452
    %486 = vmatmul.f32.gmra.mxu0 %v436
    %v487 = vpop.f32.mrf.mxu0
    %v488 = vadd.f32 %v469, %v487
    %489 = vmatmul.f32.gmra.mxu0 %v451
    %v490 = vpop.f32.mrf.mxu0
    %v491 = vadd.f32 %v469, %v490
    %492 = vdwg.mxu0
    %v493 = vxor.u32 %v488, 2147483648
    %v494 = vxor.u32 %v491, 2147483648
    %v495 = vmul.f32 %v493, 1.442695
    %v496 = vpow.pop %v495
    %v497 = vmul.f32 %v494, 1.442695
    %v498 = vpow.pop %v497
    %v499 = vadd.f32 %v496, 1.0
    %v500 = vadd.f32 %v498, 1.0
    %v501 = vrcp.pop %v499
    %v502 = vmul.f32 %v499, %v501
    %v503 = vsub.f32 1.0, %v502
    %v504 = vmul.f32 %v501, %v503
    %v505 = vadd.f32 %v501, %v504
    %vm506 = vweird.f32 %v499
    %vm507 = vweird.f32 %v501
    %vm508 = vmor %vm506, %vm507
    %v509 = vsel %vm508, %v501, %v505
    %v510 = vand.u32 2147483647, %v499
    %vm511 = vcmp.eq.f32.partialorder %v510, 8.507059e+37
    %v512 = vand.u32 %v499, 2147483648
    %v513 = vor.u32 1.1754944e-38, %v512
    %v514 = vsel %vm511, %v513, %v509
    %v515 = vmul.f32 1.0, %v514
    %v516 = vrcp.pop %v500
    %v517 = vmul.f32 %v500, %v516
    %v518 = vsub.f32 1.0, %v517
    %v519 = vmul.f32 %v516, %v518
    %v520 = vadd.f32 %v516, %v519
    %vm521 = vweird.f32 %v500
    %vm522 = vweird.f32 %v516
    %vm523 = vmor %vm521, %vm522
    %v524 = vsel %vm523, %v516, %v520
    %v525 = vand.u32 2147483647, %v500
    %vm526 = vcmp.eq.f32.partialorder %v525, 8.507059e+37
    %v527 = vand.u32 %v500, 2147483648
    %v528 = vor.u32 1.1754944e-38, %v527
    %v529 = vsel %vm526, %v528, %v524
    %v530 = vmul.f32 1.0, %v529
    %531 = vst [vmem:[%s8] sm:$0xff] %v515
    %532 = vst [vmem:[%s8 + $0x8] sm:$0xff] %v530
    // Predicated region
    $region58: #{_autoencoder_forward_impl.1} parent=1 // pred_check
      _
    $region59: #{_autoencoder_forward_impl.1} parent=1 // pred_check_branch
      %534 = sbr.rel (0) target = $region61
    $region60: #{_autoencoder_forward_impl.1} parent=1 // pred_region
      _
    $region61: #{_autoencoder_forward_impl.1} parent=1 // pred_fallthru
      _
    // Predicated region
    $region62: #{_autoencoder_forward_impl.1} parent=1 // pred_check
      _
    $region63: #{_autoencoder_forward_impl.1} parent=1 // pred_check_branch
      %536 = sbr.rel (0) target = $region65
    $region64: #{_autoencoder_forward_impl.1} parent=1 // pred_region
      _
    $region65: #{_autoencoder_forward_impl.1} parent=1 // pred_fallthru
      _
    %537 = vsyncpa [#allocation4], 1
    %538 = vsyncpa [#allocation6], 1
    %539 = vsyncpa [#allocation9], 1
    %540 = vsyncpa [#allocation12], 1

</llo_original>
